<compile_context>
chip_gen: v6e
topology: v6e:2x2x1
jax: 0.10.0
libtpu: 0.0.40
codegen_flags: <defaults>
</compile_context>

<pallas_src>
import functools

import numpy as np
import jax
import jax.numpy as jnp
from jax.experimental import pallas as pl
from jax.experimental.pallas import tpu as pltpu


# ---------------------------------------------------------------------------
# "config" (stand-in for the DictConfig the torch module receives)
# ---------------------------------------------------------------------------
CONFIG = {
    "leaky_relu_negative_slope": 0.2,
    # (in_channels, out_channels, kernel_size, stride, padding)
    "conv_blocks": [
        (4, 8, 3, 2, 1),
        (8, 16, 3, 2, 1),
    ],
    "output_layer": dict(in_channels=16, out_channels=1, kernel_size=4, stride=1, padding=0),
}
BN_EPS = 1e-5


def _conv_out(n, k, s, p):
    return (n + 2 * p - k) // s + 1


# ---------------------------------------------------------------------------
# The single fused kernel.  All intermediates live in vregs/VMEM; every conv is a
# dense matmul with batch folded into M.
# ---------------------------------------------------------------------------
def _disc_kernel(*refs, n_blocks, taps_per_block, slope):
    it = iter(refs)

    def leaky(v):
        return jnp.where(v >= 0, v, slope * v)

    def batchnorm(y, gamma, beta):
        # Training-mode BatchNorm2d: biased batch statistics, two-pass (mean then var).
        m = y.shape[0]
        mu = jnp.sum(y, axis=0, keepdims=True) * (1.0 / m)
        d = y - mu
        var = jnp.sum(d * d, axis=0, keepdims=True) * (1.0 / m)
        return gamma * jax.lax.rsqrt(var + BN_EPS) * d + beta

    # ---- block 0: conv == one im2col matmul (im2col LHS built in the wrapper) ----
    lhs_ref, w_ref, b_ref, g_ref, bt_ref = [next(it) for _ in range(5)]
    y = jnp.dot(lhs_ref[...], w_ref[...],
                preferred_element_type=jnp.float32) + b_ref[...]
    act = leaky(batchnorm(y, g_ref[...], bt_ref[...]))          # (N*H1*W1, C1) f32

    # ---- blocks 1..: one MXU "gather" matmul (the 0/1 selection matrix implements both
    #      the strided patch extraction and the zero padding ring), then k*k accumulating
    #      tap matmuls with batch+space folded into M. ----
    for blk in range(1, n_blocks):
        gath_ref, w_ref, b_ref, g_ref, bt_ref = [next(it) for _ in range(5)]
        kk = taps_per_block[blk]
        m_out = gath_ref.shape[0] // kk
        cout = w_ref.shape[-1]
        gathered = jnp.dot(gath_ref[...], act.astype(jnp.bfloat16),
                           preferred_element_type=jnp.float32)  # (kk*M, Cin), exact gather
        gathered = gathered.astype(jnp.bfloat16)
        acc = jnp.zeros((m_out, cout), jnp.float32)
        for t in range(kk):                                     # static, sublane-aligned slices
            acc = acc + jnp.dot(gathered[t * m_out:(t + 1) * m_out, :], w_ref[t],
                                preferred_element_type=jnp.float32)
        act = leaky(batchnorm(acc + b_ref[...], g_ref[...], bt_ref[...]))

    # ---- output layer: full-map valid conv == per-image weighted sum; sigmoid on EUP ----
    wout_ref, sel_ref, bout_ref, out_ref = [next(it) for _ in range(4)]
    p = act * wout_ref[...]                                            # (M_last, C_last) f32
    per_img = jnp.dot(sel_ref[...], p, preferred_element_type=jnp.float32)  # (N, C_last)
    logits = jnp.sum(per_img, axis=1, keepdims=True) + bout_ref[...]        # (N, 1)
    out_ref[...] = 1.0 / (1.0 + jnp.exp(-logits))


# ---------------------------------------------------------------------------
# Wrapper-side layout helpers (pure XLA / numpy constants)
# ---------------------------------------------------------------------------
def _im2col_first(x_nhwc, k, s, p):
    """im2col for the first conv: (N*Ho*Wo, k*k*C) with columns ordered (i, j, c)."""
    n, h, w, c = x_nhwc.shape
    ho, wo = _conv_out(h, k, s, p), _conv_out(w, k, s, p)
    xp = jnp.pad(x_nhwc, ((0, 0), (p, p), (p, p), (0, 0)))
    cols = []
    for i in range(k):
        for j in range(k):
            cols.append(xp[:, i:i + s * (ho - 1) + 1:s, j:j + s * (wo - 1) + 1:s, :])
    patches = jnp.stack(cols, axis=3)                    # (n, ho, wo, k*k, c)
    return patches.reshape(n * ho * wo, k * k * c), ho, wo


def _gather_matrix(n, h_in, w_in, k, s, p, ho, wo):
    """0/1 selection matrix that turns the MXU into the im2col gather engine.
    Row (t*M_out + m) picks the activation row feeding tap t of output position m;
    out-of-range taps (the conv padding ring) stay all-zero."""
    m_out, m_in = n * ho * wo, n * h_in * w_in
    g = np.zeros((k * k, m_out, m_in), np.float32)
    for i in range(k):
        for j in range(k):
            for nn in range(n):
                for oh in range(ho):
                    for ow in range(wo):
                        hh, ww = s * oh + i - p, s * ow + j - p
                        if 0 <= hh < h_in and 0 <= ww < w_in:
                            g[i * k + j,
                              nn * ho * wo + oh * wo + ow,
                              nn * h_in * w_in + hh * w_in + ww] = 1.0
    return g.reshape(k * k * m_out, m_in)


# ---------------------------------------------------------------------------
# Forward pass
# ---------------------------------------------------------------------------
def discriminator_forward(x_nchw, params, config):
    slope = float(config["leaky_relu_negative_slope"])
    blocks = config["conv_blocks"]
    n = x_nchw.shape[0]
    x = jnp.transpose(x_nchw, (0, 2, 3, 1)).astype(jnp.float32)   # NHWC

    # Block 0: wrapper-side im2col (a single ~18 KiB relayout), bf16 operands for the MXU.
    ci0, co0, k0, s0, p0 = blocks[0]
    lhs0, h_cur, w_cur = _im2col_first(x, k0, s0, p0)
    w0, b0, g0, bt0 = params["blocks"][0]
    inputs = [
        lhs0.astype(jnp.bfloat16),
        jnp.transpose(w0, (2, 3, 1, 0)).reshape(k0 * k0 * ci0, co0).astype(jnp.bfloat16),
        b0.reshape(1, -1).astype(jnp.float32),
        g0.reshape(1, -1).astype(jnp.float32),
        bt0.reshape(1, -1).astype(jnp.float32),
    ]
    taps = [k0 * k0]
    c_cur = co0

    # Later blocks: constant 0/1 gather matrices + per-tap weight matrices.
    for (ci, co, k, s, p), (wgt, b, g, bt) in zip(blocks[1:], params["blocks"][1:]):
        ho, wo = _conv_out(h_cur, k, s, p), _conv_out(w_cur, k, s, p)
        inputs += [
            jnp.asarray(_gather_matrix(n, h_cur, w_cur, k, s, p, ho, wo), jnp.bfloat16),
            jnp.transpose(wgt, (2, 3, 1, 0)).reshape(k * k, ci, co).astype(jnp.bfloat16),
            b.reshape(1, -1).astype(jnp.float32),
            g.reshape(1, -1).astype(jnp.float32),
            bt.reshape(1, -1).astype(jnp.float32),
        ]
        taps.append(k * k)
        h_cur, w_cur, c_cur = ho, wo, co

    # Output layer constants: kernel spans the whole remaining map -> one logit per image.
    oc = config["output_layer"]
    w_out, b_out = params["out"]
    assert (oc["kernel_size"] == h_cur == w_cur and oc["stride"] == 1
            and oc["padding"] == 0 and oc["out_channels"] == 1)
    wout_hw = jnp.transpose(w_out, (2, 3, 1, 0)).reshape(h_cur * w_cur, c_cur)
    sel = np.zeros((n, n * h_cur * w_cur), np.float32)
    for nn in range(n):
        sel[nn, nn * h_cur * w_cur:(nn + 1) * h_cur * w_cur] = 1.0
    inputs += [
        jnp.tile(wout_hw, (n, 1)).astype(jnp.float32),   # (N*H*W, C): per-image weight map
        jnp.asarray(sel),                                # (N, N*H*W): per-image row selector
        b_out.reshape(1, 1).astype(jnp.float32),
    ]

    kern = functools.partial(_disc_kernel, n_blocks=len(blocks),
                             taps_per_block=tuple(taps), slope=slope)
    return pl.pallas_call(
        kern,
        out_shape=jax.ShapeDtypeStruct((n, 1), jnp.float32),
        compiler_params=pltpu.CompilerParams(vmem_limit_bytes=32 * 1024 * 1024),
    )(*inputs)


# ---------------------------------------------------------------------------
# Deterministic parameter init (shapes as nn.Conv2d / nn.BatchNorm2d would create)
# ---------------------------------------------------------------------------
def init_params(key, config):
    params = {"blocks": []}
    for (ci, co, k, s, p) in config["conv_blocks"]:
        key, k1, k2, k3, k4 = jax.random.split(key, 5)
        w = jax.random.normal(k1, (co, ci, k, k), jnp.float32) * 0.1
        b = jax.random.normal(k2, (co,), jnp.float32) * 0.1
        g = 1.0 + 0.1 * jax.random.normal(k3, (co,), jnp.float32)
        bt = 0.1 * jax.random.normal(k4, (co,), jnp.float32)
        params["blocks"].append((w, b, g, bt))
    oc = config["output_layer"]
    key, k1, k2 = jax.random.split(key, 3)
    w_out = jax.random.normal(
        k1, (oc["out_channels"], oc["in_channels"], oc["kernel_size"], oc["kernel_size"]),
        jnp.float32) * 0.1
    b_out = jax.random.normal(k2, (oc["out_channels"],), jnp.float32) * 0.1
    params["out"] = (w_out, b_out)
    return params


# ---------------------------------------------------------------------------
# Pure-JAX reference (lax.conv) for correctness checking.
#   mxu_dtype=bf16 matches the kernel's MXU-operand cast (tight check);
#   mxu_dtype=f32 is the "true" f32 torch semantics (loose check).
# ---------------------------------------------------------------------------
def _ref_forward(x_nchw, params, config, mxu_dtype=jnp.float32):
    slope = config["leaky_relu_negative_slope"]
    x = x_nchw.astype(jnp.float32)
    for (w, b, g, bt), (ci, co, k, s, p) in zip(params["blocks"], config["conv_blocks"]):
        y = jax.lax.conv_general_dilated(
            x.astype(mxu_dtype), w.astype(mxu_dtype), (s, s), [(p, p), (p, p)],
            dimension_numbers=("NCHW", "OIHW", "NCHW"),
            preferred_element_type=jnp.float32) + b.reshape(1, -1, 1, 1)
        mu = jnp.mean(y, axis=(0, 2, 3), keepdims=True)
        var = jnp.mean(jnp.square(y - mu), axis=(0, 2, 3), keepdims=True)
        y = (y - mu) * jax.lax.rsqrt(var + BN_EPS)
        y = g.reshape(1, -1, 1, 1) * y + bt.reshape(1, -1, 1, 1)
        x = jnp.where(y >= 0, y, slope * y)
    oc = config["output_layer"]
    w_out, b_out = params["out"]
    y = jax.lax.conv_general_dilated(
        x, w_out, (oc["stride"],) * 2, [(oc["padding"],) * 2] * 2,
        dimension_numbers=("NCHW", "OIHW", "NCHW")) + b_out.reshape(1, -1, 1, 1)
    pred = jax.nn.sigmoid(y)
    return pred.reshape(pred.shape[0], -1)


if __name__ == "__main__":
    key = jax.random.PRNGKey(0)
    key, xkey = jax.random.split(key)
    x = jax.random.normal(xkey, (2, 4, 16, 16), jnp.float32)   # NCHW, like PyTorch

    params = init_params(jax.random.PRNGKey(42), CONFIG)

    fwd = jax.jit(lambda xx, pp: discriminator_forward(xx, pp, CONFIG))
    out = jax.block_until_ready(fwd(x, params))
    assert out.shape == (2, 1), out.shape

    # Tight check vs a reference with matching bf16 MXU operands.
    ref_bf16 = jax.block_until_ready(_ref_forward(x, params, CONFIG, mxu_dtype=jnp.bfloat16))
    assert jnp.allclose(out, ref_bf16, atol=5e-3, rtol=5e-3), (out, ref_bf16)

    # Loose semantic check vs the full-f32 reference (bf16 MXU inputs cost ~1e-3 here).
    ref_f32 = jax.block_until_ready(_ref_forward(x, params, CONFIG, mxu_dtype=jnp.float32))
    assert jnp.allclose(out, ref_f32, atol=5e-2, rtol=5e-2), (out, ref_f32)

    print("KERNEL_OK")
</pallas_src>

<mosaic_0001>
module attributes {stable_mosaic.version = 11 : i64} {
  func.func @_disc_kernel(%arg0: memref<128x36xbf16, #tpu.memory_space<vmem>>, %arg1: memref<36x8xbf16, #tpu.memory_space<vmem>>, %arg2: memref<1x8xf32, #tpu.memory_space<vmem>>, %arg3: memref<1x8xf32, #tpu.memory_space<vmem>>, %arg4: memref<1x8xf32, #tpu.memory_space<vmem>>, %arg5: memref<288x128xbf16, #tpu.memory_space<vmem>>, %arg6: memref<9x8x16xbf16, #tpu.memory_space<vmem>>, %arg7: memref<1x16xf32, #tpu.memory_space<vmem>>, %arg8: memref<1x16xf32, #tpu.memory_space<vmem>>, %arg9: memref<1x16xf32, #tpu.memory_space<vmem>>, %arg10: memref<32x16xf32, #tpu.memory_space<vmem>>, %arg11: memref<2x32xf32, #tpu.memory_space<vmem>>, %arg12: memref<1x1xf32, #tpu.memory_space<vmem>>, %arg13: memref<2x1xf32, #tpu.memory_space<vmem>>) attributes {dimension_semantics = [], scalar_prefetch = 0 : i64, scratch_operands = 0 : i64, tpu.core_type = #tpu.core_type<tc>} {
    %c0 = arith.constant 0 : index
    %c0_0 = arith.constant 0 : index
    %0 = vector.load %arg0[%c0, %c0_0] : memref<128x36xbf16, #tpu.memory_space<vmem>>, vector<128x36xbf16>
    %c0_1 = arith.constant 0 : index
    %c0_2 = arith.constant 0 : index
    %1 = vector.load %arg1[%c0_1, %c0_2] : memref<36x8xbf16, #tpu.memory_space<vmem>>, vector<36x8xbf16>
    %cst = arith.constant dense<0.000000e+00> : vector<128x8xf32>
    %2 = tpu.matmul %0, %1, %cst {dimension_numbers = #tpu.dot_dimension_numbers<[1], [0], [0], [1], [0, 0, 1, 1], [], []>} : vector<128x36xbf16>, vector<36x8xbf16>, vector<128x8xf32> -> vector<128x8xf32>
    %c0_3 = arith.constant 0 : index
    %c0_4 = arith.constant 0 : index
    %3 = vector.load %arg2[%c0_3, %c0_4] : memref<1x8xf32, #tpu.memory_space<vmem>>, vector<1x8xf32>
    %4 = vector.broadcast %3 : vector<1x8xf32> to vector<128x8xf32>
    %5 = arith.addf %2, %4 : vector<128x8xf32>
    %c0_5 = arith.constant 0 : index
    %c0_6 = arith.constant 0 : index
    %6 = vector.load %arg3[%c0_5, %c0_6] : memref<1x8xf32, #tpu.memory_space<vmem>>, vector<1x8xf32>
    %c0_7 = arith.constant 0 : index
    %c0_8 = arith.constant 0 : index
    %7 = vector.load %arg4[%c0_7, %c0_8] : memref<1x8xf32, #tpu.memory_space<vmem>>, vector<1x8xf32>
    %cst_9 = arith.constant dense<0.000000e+00> : vector<8xf32>
    %8 = vector.multi_reduction <add>, %5, %cst_9 [0] : vector<128x8xf32> to vector<8xf32>
    %9 = vector.shape_cast %8 : vector<8xf32> to vector<1x8xf32>
    %cst_10 = arith.constant 7.812500e-03 : f32
    %10 = vector.broadcast %cst_10 : f32 to vector<1x8xf32>
    %11 = arith.mulf %9, %10 : vector<1x8xf32>
    %12 = vector.broadcast %11 : vector<1x8xf32> to vector<128x8xf32>
    %13 = arith.subf %5, %12 : vector<128x8xf32>
    %14 = arith.mulf %13, %13 : vector<128x8xf32>
    %cst_11 = arith.constant dense<0.000000e+00> : vector<8xf32>
    %15 = vector.multi_reduction <add>, %14, %cst_11 [0] : vector<128x8xf32> to vector<8xf32>
    %16 = vector.shape_cast %15 : vector<8xf32> to vector<1x8xf32>
    %cst_12 = arith.constant 7.812500e-03 : f32
    %17 = vector.broadcast %cst_12 : f32 to vector<1x8xf32>
    %18 = arith.mulf %16, %17 : vector<1x8xf32>
    %cst_13 = arith.constant 9.99999974E-6 : f32
    %19 = vector.broadcast %cst_13 : f32 to vector<1x8xf32>
    %20 = arith.addf %18, %19 : vector<1x8xf32>
    %21 = math.rsqrt %20 : vector<1x8xf32>
    %22 = arith.mulf %6, %21 : vector<1x8xf32>
    %23 = vector.broadcast %22 : vector<1x8xf32> to vector<128x8xf32>
    %24 = arith.mulf %23, %13 : vector<128x8xf32>
    %25 = vector.broadcast %7 : vector<1x8xf32> to vector<128x8xf32>
    %26 = arith.addf %24, %25 : vector<128x8xf32>
    %cst_14 = arith.constant 0.000000e+00 : f32
    %27 = vector.broadcast %cst_14 : f32 to vector<128x8xf32>
    %28 = arith.cmpf oge, %26, %27 : vector<128x8xf32>
    %cst_15 = arith.constant 2.000000e-01 : f32
    %29 = vector.broadcast %cst_15 : f32 to vector<128x8xf32>
    %30 = arith.mulf %29, %26 : vector<128x8xf32>
    %31 = arith.select %28, %26, %30 : vector<128x8xi1>, vector<128x8xf32>
    %c0_16 = arith.constant 0 : index
    %c0_17 = arith.constant 0 : index
    %32 = vector.load %arg5[%c0_16, %c0_17] : memref<288x128xbf16, #tpu.memory_space<vmem>>, vector<288x128xbf16>
    %33 = arith.truncf %31 : vector<128x8xf32> to vector<128x8xbf16>
    %cst_18 = arith.constant dense<0.000000e+00> : vector<288x8xf32>
    %34 = tpu.matmul %32, %33, %cst_18 {dimension_numbers = #tpu.dot_dimension_numbers<[1], [0], [0], [1], [0, 0, 1, 1], [], []>} : vector<288x128xbf16>, vector<128x8xbf16>, vector<288x8xf32> -> vector<288x8xf32>
    %35 = arith.truncf %34 : vector<288x8xf32> to vector<288x8xbf16>
    %cst_19 = arith.constant 0.000000e+00 : f32
    %36 = vector.broadcast %cst_19 : f32 to vector<32x16xf32>
    %37 = vector.extract_strided_slice %35 {offsets = [0, 0], sizes = [32, 8], strides = [1, 1]} : vector<288x8xbf16> to vector<32x8xbf16>
    %c0_20 = arith.constant 0 : index
    %c0_21 = arith.constant 0 : index
    %c0_22 = arith.constant 0 : index
    %38 = vector.load %arg6[%c0_20, %c0_21, %c0_22] : memref<9x8x16xbf16, #tpu.memory_space<vmem>>, vector<1x8x16xbf16>
    %39 = vector.shape_cast %38 : vector<1x8x16xbf16> to vector<8x16xbf16>
    %cst_23 = arith.constant dense<0.000000e+00> : vector<32x16xf32>
    %40 = tpu.matmul %37, %39, %cst_23 {dimension_numbers = #tpu.dot_dimension_numbers<[1], [0], [0], [1], [0, 0, 1, 1], [], []>} : vector<32x8xbf16>, vector<8x16xbf16>, vector<32x16xf32> -> vector<32x16xf32>
    %41 = arith.addf %36, %40 : vector<32x16xf32>
    %42 = vector.extract_strided_slice %35 {offsets = [32, 0], sizes = [32, 8], strides = [1, 1]} : vector<288x8xbf16> to vector<32x8xbf16>
    %c1 = arith.constant 1 : index
    %c0_24 = arith.constant 0 : index
    %c0_25 = arith.constant 0 : index
    %43 = vector.load %arg6[%c1, %c0_24, %c0_25] : memref<9x8x16xbf16, #tpu.memory_space<vmem>>, vector<1x8x16xbf16>
    %44 = vector.shape_cast %43 : vector<1x8x16xbf16> to vector<8x16xbf16>
    %cst_26 = arith.constant dense<0.000000e+00> : vector<32x16xf32>
    %45 = tpu.matmul %42, %44, %cst_26 {dimension_numbers = #tpu.dot_dimension_numbers<[1], [0], [0], [1], [0, 0, 1, 1], [], []>} : vector<32x8xbf16>, vector<8x16xbf16>, vector<32x16xf32> -> vector<32x16xf32>
    %46 = arith.addf %41, %45 : vector<32x16xf32>
    %47 = vector.extract_strided_slice %35 {offsets = [64, 0], sizes = [32, 8], strides = [1, 1]} : vector<288x8xbf16> to vector<32x8xbf16>
    %c2 = arith.constant 2 : index
    %c0_27 = arith.constant 0 : index
    %c0_28 = arith.constant 0 : index
    %48 = vector.load %arg6[%c2, %c0_27, %c0_28] : memref<9x8x16xbf16, #tpu.memory_space<vmem>>, vector<1x8x16xbf16>
    %49 = vector.shape_cast %48 : vector<1x8x16xbf16> to vector<8x16xbf16>
    %cst_29 = arith.constant dense<0.000000e+00> : vector<32x16xf32>
    %50 = tpu.matmul %47, %49, %cst_29 {dimension_numbers = #tpu.dot_dimension_numbers<[1], [0], [0], [1], [0, 0, 1, 1], [], []>} : vector<32x8xbf16>, vector<8x16xbf16>, vector<32x16xf32> -> vector<32x16xf32>
    %51 = arith.addf %46, %50 : vector<32x16xf32>
    %52 = vector.extract_strided_slice %35 {offsets = [96, 0], sizes = [32, 8], strides = [1, 1]} : vector<288x8xbf16> to vector<32x8xbf16>
    %c3 = arith.constant 3 : index
    %c0_30 = arith.constant 0 : index
    %c0_31 = arith.constant 0 : index
    %53 = vector.load %arg6[%c3, %c0_30, %c0_31] : memref<9x8x16xbf16, #tpu.memory_space<vmem>>, vector<1x8x16xbf16>
    %54 = vector.shape_cast %53 : vector<1x8x16xbf16> to vector<8x16xbf16>
    %cst_32 = arith.constant dense<0.000000e+00> : vector<32x16xf32>
    %55 = tpu.matmul %52, %54, %cst_32 {dimension_numbers = #tpu.dot_dimension_numbers<[1], [0], [0], [1], [0, 0, 1, 1], [], []>} : vector<32x8xbf16>, vector<8x16xbf16>, vector<32x16xf32> -> vector<32x16xf32>
    %56 = arith.addf %51, %55 : vector<32x16xf32>
    %57 = vector.extract_strided_slice %35 {offsets = [128, 0], sizes = [32, 8], strides = [1, 1]} : vector<288x8xbf16> to vector<32x8xbf16>
    %c4 = arith.constant 4 : index
    %c0_33 = arith.constant 0 : index
    %c0_34 = arith.constant 0 : index
    %58 = vector.load %arg6[%c4, %c0_33, %c0_34] : memref<9x8x16xbf16, #tpu.memory_space<vmem>>, vector<1x8x16xbf16>
    %59 = vector.shape_cast %58 : vector<1x8x16xbf16> to vector<8x16xbf16>
    %cst_35 = arith.constant dense<0.000000e+00> : vector<32x16xf32>
    %60 = tpu.matmul %57, %59, %cst_35 {dimension_numbers = #tpu.dot_dimension_numbers<[1], [0], [0], [1], [0, 0, 1, 1], [], []>} : vector<32x8xbf16>, vector<8x16xbf16>, vector<32x16xf32> -> vector<32x16xf32>
    %61 = arith.addf %56, %60 : vector<32x16xf32>
    %62 = vector.extract_strided_slice %35 {offsets = [160, 0], sizes = [32, 8], strides = [1, 1]} : vector<288x8xbf16> to vector<32x8xbf16>
    %c5 = arith.constant 5 : index
    %c0_36 = arith.constant 0 : index
    %c0_37 = arith.constant 0 : index
    %63 = vector.load %arg6[%c5, %c0_36, %c0_37] : memref<9x8x16xbf16, #tpu.memory_space<vmem>>, vector<1x8x16xbf16>
    %64 = vector.shape_cast %63 : vector<1x8x16xbf16> to vector<8x16xbf16>
    %cst_38 = arith.constant dense<0.000000e+00> : vector<32x16xf32>
    %65 = tpu.matmul %62, %64, %cst_38 {dimension_numbers = #tpu.dot_dimension_numbers<[1], [0], [0], [1], [0, 0, 1, 1], [], []>} : vector<32x8xbf16>, vector<8x16xbf16>, vector<32x16xf32> -> vector<32x16xf32>
    %66 = arith.addf %61, %65 : vector<32x16xf32>
    %67 = vector.extract_strided_slice %35 {offsets = [192, 0], sizes = [32, 8], strides = [1, 1]} : vector<288x8xbf16> to vector<32x8xbf16>
    %c6 = arith.constant 6 : index
    %c0_39 = arith.constant 0 : index
    %c0_40 = arith.constant 0 : index
    %68 = vector.load %arg6[%c6, %c0_39, %c0_40] : memref<9x8x16xbf16, #tpu.memory_space<vmem>>, vector<1x8x16xbf16>
    %69 = vector.shape_cast %68 : vector<1x8x16xbf16> to vector<8x16xbf16>
    %cst_41 = arith.constant dense<0.000000e+00> : vector<32x16xf32>
    %70 = tpu.matmul %67, %69, %cst_41 {dimension_numbers = #tpu.dot_dimension_numbers<[1], [0], [0], [1], [0, 0, 1, 1], [], []>} : vector<32x8xbf16>, vector<8x16xbf16>, vector<32x16xf32> -> vector<32x16xf32>
    %71 = arith.addf %66, %70 : vector<32x16xf32>
    %72 = vector.extract_strided_slice %35 {offsets = [224, 0], sizes = [32, 8], strides = [1, 1]} : vector<288x8xbf16> to vector<32x8xbf16>
    %c7 = arith.constant 7 : index
    %c0_42 = arith.constant 0 : index
    %c0_43 = arith.constant 0 : index
    %73 = vector.load %arg6[%c7, %c0_42, %c0_43] : memref<9x8x16xbf16, #tpu.memory_space<vmem>>, vector<1x8x16xbf16>
    %74 = vector.shape_cast %73 : vector<1x8x16xbf16> to vector<8x16xbf16>
    %cst_44 = arith.constant dense<0.000000e+00> : vector<32x16xf32>
    %75 = tpu.matmul %72, %74, %cst_44 {dimension_numbers = #tpu.dot_dimension_numbers<[1], [0], [0], [1], [0, 0, 1, 1], [], []>} : vector<32x8xbf16>, vector<8x16xbf16>, vector<32x16xf32> -> vector<32x16xf32>
    %76 = arith.addf %71, %75 : vector<32x16xf32>
    %77 = vector.extract_strided_slice %35 {offsets = [256, 0], sizes = [32, 8], strides = [1, 1]} : vector<288x8xbf16> to vector<32x8xbf16>
    %c8 = arith.constant 8 : index
    %c0_45 = arith.constant 0 : index
    %c0_46 = arith.constant 0 : index
    %78 = vector.load %arg6[%c8, %c0_45, %c0_46] : memref<9x8x16xbf16, #tpu.memory_space<vmem>>, vector<1x8x16xbf16>
    %79 = vector.shape_cast %78 : vector<1x8x16xbf16> to vector<8x16xbf16>
    %cst_47 = arith.constant dense<0.000000e+00> : vector<32x16xf32>
    %80 = tpu.matmul %77, %79, %cst_47 {dimension_numbers = #tpu.dot_dimension_numbers<[1], [0], [0], [1], [0, 0, 1, 1], [], []>} : vector<32x8xbf16>, vector<8x16xbf16>, vector<32x16xf32> -> vector<32x16xf32>
    %81 = arith.addf %76, %80 : vector<32x16xf32>
    %c0_48 = arith.constant 0 : index
    %c0_49 = arith.constant 0 : index
    %82 = vector.load %arg7[%c0_48, %c0_49] : memref<1x16xf32, #tpu.memory_space<vmem>>, vector<1x16xf32>
    %83 = vector.broadcast %82 : vector<1x16xf32> to vector<32x16xf32>
    %84 = arith.addf %81, %83 : vector<32x16xf32>
    %c0_50 = arith.constant 0 : index
    %c0_51 = arith.constant 0 : index
    %85 = vector.load %arg8[%c0_50, %c0_51] : memref<1x16xf32, #tpu.memory_space<vmem>>, vector<1x16xf32>
    %c0_52 = arith.constant 0 : index
    %c0_53 = arith.constant 0 : index
    %86 = vector.load %arg9[%c0_52, %c0_53] : memref<1x16xf32, #tpu.memory_space<vmem>>, vector<1x16xf32>
    %cst_54 = arith.constant dense<0.000000e+00> : vector<16xf32>
    %87 = vector.multi_reduction <add>, %84, %cst_54 [0] : vector<32x16xf32> to vector<16xf32>
    %88 = vector.shape_cast %87 : vector<16xf32> to vector<1x16xf32>
    %cst_55 = arith.constant 3.125000e-02 : f32
    %89 = vector.broadcast %cst_55 : f32 to vector<1x16xf32>
    %90 = arith.mulf %88, %89 : vector<1x16xf32>
    %91 = vector.broadcast %90 : vector<1x16xf32> to vector<32x16xf32>
    %92 = arith.subf %84, %91 : vector<32x16xf32>
    %93 = arith.mulf %92, %92 : vector<32x16xf32>
    %cst_56 = arith.constant dense<0.000000e+00> : vector<16xf32>
    %94 = vector.multi_reduction <add>, %93, %cst_56 [0] : vector<32x16xf32> to vector<16xf32>
    %95 = vector.shape_cast %94 : vector<16xf32> to vector<1x16xf32>
    %cst_57 = arith.constant 3.125000e-02 : f32
    %96 = vector.broadcast %cst_57 : f32 to vector<1x16xf32>
    %97 = arith.mulf %95, %96 : vector<1x16xf32>
    %cst_58 = arith.constant 9.99999974E-6 : f32
    %98 = vector.broadcast %cst_58 : f32 to vector<1x16xf32>
    %99 = arith.addf %97, %98 : vector<1x16xf32>
    %100 = math.rsqrt %99 : vector<1x16xf32>
    %101 = arith.mulf %85, %100 : vector<1x16xf32>
    %102 = vector.broadcast %101 : vector<1x16xf32> to vector<32x16xf32>
    %103 = arith.mulf %102, %92 : vector<32x16xf32>
    %104 = vector.broadcast %86 : vector<1x16xf32> to vector<32x16xf32>
    %105 = arith.addf %103, %104 : vector<32x16xf32>
    %cst_59 = arith.constant 0.000000e+00 : f32
    %106 = vector.broadcast %cst_59 : f32 to vector<32x16xf32>
    %107 = arith.cmpf oge, %105, %106 : vector<32x16xf32>
    %cst_60 = arith.constant 2.000000e-01 : f32
    %108 = vector.broadcast %cst_60 : f32 to vector<32x16xf32>
    %109 = arith.mulf %108, %105 : vector<32x16xf32>
    %110 = arith.select %107, %105, %109 : vector<32x16xi1>, vector<32x16xf32>
    %c0_61 = arith.constant 0 : index
    %c0_62 = arith.constant 0 : index
    %111 = vector.load %arg10[%c0_61, %c0_62] : memref<32x16xf32, #tpu.memory_space<vmem>>, vector<32x16xf32>
    %112 = arith.mulf %110, %111 : vector<32x16xf32>
    %c0_63 = arith.constant 0 : index
    %c0_64 = arith.constant 0 : index
    %113 = vector.load %arg11[%c0_63, %c0_64] : memref<2x32xf32, #tpu.memory_space<vmem>>, vector<2x32xf32>
    %cst_65 = arith.constant dense<0.000000e+00> : vector<2x16xf32>
    %114 = tpu.matmul %113, %112, %cst_65 {dimension_numbers = #tpu.dot_dimension_numbers<[1], [0], [0], [1], [0, 0, 1, 1], [], []>} : vector<2x32xf32>, vector<32x16xf32>, vector<2x16xf32> -> vector<2x16xf32>
    %cst_66 = arith.constant dense<0.000000e+00> : vector<2xf32>
    %115 = vector.multi_reduction <add>, %114, %cst_66 [1] : vector<2x16xf32> to vector<2xf32>
    %116 = vector.shape_cast %115 : vector<2xf32> to vector<2x1xf32>
    %c0_67 = arith.constant 0 : index
    %c0_68 = arith.constant 0 : index
    %117 = vector.load %arg12[%c0_67, %c0_68] : memref<1x1xf32, #tpu.memory_space<vmem>>, vector<1x1xf32>
    %118 = vector.broadcast %117 : vector<1x1xf32> to vector<2x1xf32>
    %119 = arith.addf %116, %118 : vector<2x1xf32>
    %cst_69 = arith.constant 0.000000e+00 : f32
    %120 = vector.broadcast %cst_69 : f32 to vector<2x1xf32>
    %121 = arith.subf %120, %119 : vector<2x1xf32>
    %122 = math.exp %121 : vector<2x1xf32>
    %cst_70 = arith.constant 1.000000e+00 : f32
    %123 = vector.broadcast %cst_70 : f32 to vector<2x1xf32>
    %124 = arith.addf %123, %122 : vector<2x1xf32>
    %cst_71 = arith.constant 1.000000e+00 : f32
    %125 = vector.broadcast %cst_71 : f32 to vector<2x1xf32>
    %126 = arith.divf %125, %124 : vector<2x1xf32>
    %c0_72 = arith.constant 0 : index
    %c0_73 = arith.constant 0 : index
    %127 = vector.load %arg13[%c0_72, %c0_73] : memref<2x1xf32, #tpu.memory_space<vmem>>, vector<2x1xf32>
    tpu.vector_store %arg13[%c0_72, %c0_73], %126 {strides = array<i32>} : memref<2x1xf32, #tpu.memory_space<vmem>>, vector<2x1xf32>,
    return
  }
}

</mosaic_0001>

<llo_original>
// kernel: _lambda_.1
$region0: #{_lambda_.1}
  #allocation0 [shape = 'u32[]', space=smem, size = 0x4, offset = 0x4, fixed_abs, tag = 'smem constant byte address 0x4 - core index']
  #allocation1 [shape = 'u32[144,128]{1,0:T(1,128)}', space=vmem, size = 0x12000, scoped, tag = 'internal scratch']
  #allocation2 [shape = 'f32[1,1]{1,0:T(1,128)S(1)}', space=vmem, size = 0x200, scoped, tag = 'scoped memory for _lambda_.1']
  %s0 = inlined_call_operand.vmem [shape: bf16[128,36], index: 0, kind: input, shape index: {}]
  %s1 = inlined_call_operand.vmem [shape: bf16[36,8], index: 1, kind: input, shape index: {}]
  %s2 = inlined_call_operand.vmem [shape: f32[1,8], index: 2, kind: input, shape index: {}]
  %s3 = inlined_call_operand.vmem [shape: f32[1,8], index: 3, kind: input, shape index: {}]
  %s4 = inlined_call_operand.vmem [shape: f32[1,8], index: 4, kind: input, shape index: {}]
  %s5 = inlined_call_operand.vmem [shape: bf16[288,128], index: 5, kind: input, shape index: {}]
  %s6 = inlined_call_operand.vmem [shape: bf16[9,8,16], index: 6, kind: input, shape index: {}]
  %s7 = inlined_call_operand.vmem [shape: f32[1,16], index: 7, kind: input, shape index: {}]
  %s8 = inlined_call_operand.vmem [shape: f32[1,16], index: 8, kind: input, shape index: {}]
  %s9 = inlined_call_operand.vmem [shape: f32[1,16], index: 9, kind: input, shape index: {}]
  %s10 = inlined_call_operand.vmem [shape: f32[32,16], index: 10, kind: input, shape index: {}]
  %s11 = inlined_call_operand.vmem [shape: f32[2,32], index: 11, kind: input, shape index: {}]
  %s12 = inlined_call_operand.<no memory space> [shape: f32[1,1], index: 12, kind: input, shape index: {}]
  %s13 = inlined_call_operand.vmem [shape: f32[2,1], index: 13, kind: output, shape index: {}]
  %s14 = sld [smem:[#allocation0]]
  $region62: #{_lambda_.1} parent=0
    _
  %s16 = ssub.s32 1, %s14
  %s17 = scalar_select 0, %s16, %s14
  %v18 = vstv %s12
  %19 = vst [vmem:[#allocation2] sm:$0x1] %v18
  // Predicated region
  $region2: #{_lambda_.1} parent=0 // pred_check
    _
  $region3: #{_lambda_.1} parent=0 // pred_check_branch
    %21 = sbr.rel (0) target = $region5
  $region4: #{_lambda_.1} parent=0 // pred_region
    _
  $region5: #{_lambda_.1} parent=0 // pred_fallthru
    _
  // Predicated region
  $region6: #{_lambda_.1} parent=0 // pred_check
    _
  $region7: #{_lambda_.1} parent=0 // pred_check_branch
    %23 = sbr.rel (0) target = $region9
  $region8: #{_lambda_.1} parent=0 // pred_region
    _
  $region9: #{_lambda_.1} parent=0 // pred_fallthru
    _
  // Predicated region
  $region10: #{_lambda_.1} parent=0 // pred_check
    _
  $region11: #{_lambda_.1} parent=0 // pred_check_branch
    %25 = sbr.rel (0) target = $region13
  $region12: #{_lambda_.1} parent=0 // pred_region
    _
  $region13: #{_lambda_.1} parent=0 // pred_fallthru
    _
  // Predicated region
  $region14: #{_lambda_.1} parent=0 // pred_check
    _
  $region15: #{_lambda_.1} parent=0 // pred_check_branch
    %27 = sbr.rel (0) target = $region17
  $region16: #{_lambda_.1} parent=0 // pred_region
    _
  $region17: #{_lambda_.1} parent=0 // pred_fallthru
    _
  // Predicated region
  $region18: #{_lambda_.1} parent=0 // pred_check
    _
  $region19: #{_lambda_.1} parent=0 // pred_check_branch
    %29 = sbr.rel (0) target = $region21
  $region20: #{_lambda_.1} parent=0 // pred_region
    _
  $region21: #{_lambda_.1} parent=0 // pred_fallthru
    _
  // Predicated region
  $region22: #{_lambda_.1} parent=0 // pred_check
    _
  $region23: #{_lambda_.1} parent=0 // pred_check_branch
    %31 = sbr.rel (0) target = $region25
  $region24: #{_lambda_.1} parent=0 // pred_region
    _
  $region25: #{_lambda_.1} parent=0 // pred_fallthru
    _
  // Predicated region
  $region26: #{_lambda_.1} parent=0 // pred_check
    _
  $region27: #{_lambda_.1} parent=0 // pred_check_branch
    %33 = sbr.rel (0) target = $region29
  $region28: #{_lambda_.1} parent=0 // pred_region
    _
  $region29: #{_lambda_.1} parent=0 // pred_fallthru
    _
  // Predicated region
  $region30: #{_lambda_.1} parent=0 // pred_check
    _
  $region31: #{_lambda_.1} parent=0 // pred_check_branch
    %35 = sbr.rel (0) target = $region33
  $region32: #{_lambda_.1} parent=0 // pred_region
    _
  $region33: #{_lambda_.1} parent=0 // pred_fallthru
    _
  // Predicated region
  $region34: #{_lambda_.1} parent=0 // pred_check
    _
  $region35: #{_lambda_.1} parent=0 // pred_check_branch
    %37 = sbr.rel (0) target = $region37
  $region36: #{_lambda_.1} parent=0 // pred_region
    _
  $region37: #{_lambda_.1} parent=0 // pred_fallthru
    _
  // Predicated region
  $region38: #{_lambda_.1} parent=0 // pred_check
    _
  $region39: #{_lambda_.1} parent=0 // pred_check_branch
    %39 = sbr.rel (0) target = $region41
  $region40: #{_lambda_.1} parent=0 // pred_region
    _
  $region41: #{_lambda_.1} parent=0 // pred_fallthru
    _
  // Predicated region
  $region42: #{_lambda_.1} parent=0 // pred_check
    _
  $region43: #{_lambda_.1} parent=0 // pred_check_branch
    %41 = sbr.rel (0) target = $region45
  $region44: #{_lambda_.1} parent=0 // pred_region
    _
  $region45: #{_lambda_.1} parent=0 // pred_fallthru
    _
  // Predicated region
  $region46: #{_lambda_.1} parent=0 // pred_check
    _
  $region47: #{_lambda_.1} parent=0 // pred_check_branch
    %43 = sbr.rel (0) target = $region49
  $region48: #{_lambda_.1} parent=0 // pred_region
    _
  $region49: #{_lambda_.1} parent=0 // pred_fallthru
    _
  // Predicated region
  $region50: #{_lambda_.1} parent=0 // pred_check
    _
  $region51: #{_lambda_.1} parent=0 // pred_check_branch
    %45 = sbr.rel (0) target = $region53
  $region52: #{_lambda_.1} parent=0 // pred_region
    _
  $region53: #{_lambda_.1} parent=0 // pred_fallthru
    _
  %v47 = vld [vmem:[%s0] sm:$0xf]
  %v48 = vld [vmem:[%s0 + $0x4] sm:$0xf]
  %v49 = vld [vmem:[%s0 + $0x8] sm:$0xf]
  %v50 = vld [vmem:[%s0 + $0xc] sm:$0xf]
  %v51 = vld [vmem:[%s0 + $0x10] sm:$0xf]
  %v52 = vld [vmem:[%s0 + $0x14] sm:$0xf]
  %v53 = vld [vmem:[%s0 + $0x18] sm:$0xf]
  %v54 = vld [vmem:[%s0 + $0x1c] sm:$0xf]
  %v55 = vld [vmem:[%s0 + $0x20] sm:$0xf]
  %v56 = vld [vmem:[%s0 + $0x24] sm:$0xf]
  %v57 = vld [vmem:[%s0 + $0x28] sm:$0xf]
  %v58 = vld [vmem:[%s0 + $0x2c] sm:$0xf]
  %v59 = vld [vmem:[%s0 + $0x30] sm:$0xf]
  %v60 = vld [vmem:[%s0 + $0x34] sm:$0xf]
  %v61 = vld [vmem:[%s0 + $0x38] sm:$0xf]
  %v62 = vld [vmem:[%s0 + $0x3c] sm:$0xf]
  %v63 = vld [vmem:[%s1] sm:$0xf]
  %v64 = vld [vmem:[%s1 + $0x4] sm:$0xf]
  %v65 = vld [vmem:[%s1 + $0x8] sm:$0xf]
  %v66 = vld [vmem:[%s1 + $0xc] sm:$0xf]
  %v67 = vld [vmem:[%s1 + $0x10] sm:$0x3]
  %v68 = vld [vmem:[%s2] sm:$0x1]
  %v70 = vlaneseq
  %v71 = vshrl.u32 %v70, 7
  %v72 = vsub.s32 0, %v71
  %v73 = vrot.slane %v68, %v72
  %v91 = vunpack.c.l.b16 %v47
  %v92 = vunpack.c.l.b16 %v48
  %v93 = vunpack.c.l.b16 %v49
  %v94 = vunpack.c.l.b16 %v50
  %v95 = vunpack.c.l.b16 %v51
  %v96 = vunpack.c.l.b16 %v52
  %v97 = vunpack.c.l.b16 %v53
  %v98 = vunpack.c.l.b16 %v54
  %v99 = vunpack.c.l.b16 %v55
  %v100 = vunpack.c.l.b16 %v56
  %v101 = vunpack.c.l.b16 %v57
  %v102 = vunpack.c.l.b16 %v58
  %v103 = vunpack.c.l.b16 %v59
  %v104 = vunpack.c.l.b16 %v60
  %v105 = vunpack.c.l.b16 %v61
  %v106 = vunpack.c.l.b16 %v62
  %v107 = vpack.c.b16 %v92, %v91
  %v108 = vpack.c.b16 %v94, %v93
  %v109 = vpack.c.b16 %v96, %v95
  %v110 = vpack.c.b16 %v98, %v97
  %v111 = vpack.c.b16 %v100, %v99
  %v112 = vpack.c.b16 %v102, %v101
  %v113 = vpack.c.b16 %v104, %v103
  %v114 = vpack.c.b16 %v106, %v105
  %v120 = vunpack.c.l.b16 %v63
  %v121 = vunpack.c.l.b16 %v64
  %v122 = vunpack.c.l.b16 %v65
  %v123 = vunpack.c.l.b16 %v66
  %v124 = vunpack.c.l.b16 %v67
  %v125 = vpack.c.b16 %v121, %v120
  %v126 = vpack.c.b16 %v123, %v122
  %v127 = vpack.c.b16 %v124, %v124
  %vm130 = vcmask 293888
  %v132 = vsel %vm130, %v107, 0
  %v135 = vsel %vm130, %v108, 0
  %v138 = vsel %vm130, %v109, 0
  %v141 = vsel %vm130, %v110, 0
  %v144 = vsel %vm130, %v111, 0
  %v147 = vsel %vm130, %v112, 0
  %v150 = vsel %vm130, %v113, 0
  %v153 = vsel %vm130, %v114, 0
  %vm155 = vcmask 1041408
  %v157 = vsel %vm155, %v127, 0
  %159 = vmatprep.subr.bf16.mxu0 0
  %160 = vmatpush1.bf16.msra.mxu0 0
  %161 = vmatprep.subr.bf16.mxu0 0
  %162 = vmatpush1.bf16.msra.mxu0 0
  %163 = vmatprep.subr.bf16.mxu0 0
  %164 = vmatpush1.bf16.msra.mxu0 0
  %165 = vmatprep.subr.bf16.mxu0 0
  %166 = vmatpush1.bf16.msra.mxu0 0
  %167 = vmatprep.subr.bf16.mxu0 0
  %168 = vmatpush1.bf16.msra.mxu0 0
  %169 = vmatprep.subr.bf16.mxu0 0
  %170 = vmatpush1.bf16.msra.mxu0 %v157
  %171 = vmatprep.subr.bf16.mxu0 0
  %172 = vmatpush1.bf16.msra.mxu0 %v126
  %173 = vmatprep.subr.bf16.mxu0 0
  %174 = vmatpush1.bf16.msra.mxu0 %v125
  %175 = vmatprep.subr.bf16.mxu0 0
  %176 = vmatpush2.bf16.msra.mxu0 0
  %177 = vmatprep.subr.bf16.mxu0 0
  %178 = vmatpush2.bf16.msra.mxu0 0
  %179 = vmatprep.subr.bf16.mxu0 0
  %180 = vmatpush2.bf16.msra.mxu0 0
  %181 = vmatprep.subr.bf16.mxu0 0
  %182 = vmatpush2.bf16.msra.mxu0 0
  %183 = vmatprep.subr.bf16.mxu0 0
  %184 = vmatpush2.bf16.msra.mxu0 0
  %185 = vmatprep.subr.bf16.mxu0 0
  %186 = vmatpush2.bf16.msra.mxu0 0
  %187 = vmatprep.subr.bf16.mxu0 0
  %188 = vmatpush2.bf16.msra.mxu0 0
  %189 = vmatprep.subr.bf16.mxu0 0
  %190 = vmatpush2.bf16.msra.mxu0 0
  %191 = vmatprep.mubr.bf16.mxu0 0
  %192 = vmatmul.mubr.bf16.gmra.mxu0 %v132
  %v193 = vpop.f32.mrf.mxu0
  %v194 = vadd.f32 %v73, %v193
  %v195 = vpop.f32.mrf.mxu0
  %v196 = vpop.f32.mrf.mxu0
  %v197 = vadd.f32 %v73, %v196
  %v198 = vpop.f32.mrf.mxu0
  %199 = vmatprep.mubr.bf16.mxu0 0
  %200 = vmatmul.mubr.bf16.gmra.mxu0 %v135
  %v201 = vpop.f32.mrf.mxu0
  %v202 = vadd.f32 %v73, %v201
  %v203 = vpop.f32.mrf.mxu0
  %v204 = vpop.f32.mrf.mxu0
  %v205 = vadd.f32 %v73, %v204
  %v206 = vpop.f32.mrf.mxu0
  %207 = vmatprep.mubr.bf16.mxu0 0
  %208 = vmatmul.mubr.bf16.gmra.mxu0 %v138
  %v209 = vpop.f32.mrf.mxu0
  %v210 = vadd.f32 %v73, %v209
  %v211 = vpop.f32.mrf.mxu0
  %v212 = vpop.f32.mrf.mxu0
  %v213 = vadd.f32 %v73, %v212
  %v214 = vpop.f32.mrf.mxu0
  %215 = vmatprep.mubr.bf16.mxu0 0
  %216 = vmatmul.mubr.bf16.gmra.mxu0 %v141
  %v217 = vpop.f32.mrf.mxu0
  %v218 = vadd.f32 %v73, %v217
  %v219 = vpop.f32.mrf.mxu0
  %v220 = vpop.f32.mrf.mxu0
  %v221 = vadd.f32 %v73, %v220
  %v222 = vpop.f32.mrf.mxu0
  %223 = vmatprep.mubr.bf16.mxu0 0
  %224 = vmatmul.mubr.bf16.gmra.mxu0 %v144
  %v225 = vpop.f32.mrf.mxu0
  %v226 = vadd.f32 %v73, %v225
  %v227 = vpop.f32.mrf.mxu0
  %v228 = vpop.f32.mrf.mxu0
  %v229 = vadd.f32 %v73, %v228
  %v230 = vpop.f32.mrf.mxu0
  %231 = vmatprep.mubr.bf16.mxu0 0
  %232 = vmatmul.mubr.bf16.gmra.mxu0 %v147
  %v233 = vpop.f32.mrf.mxu0
  %v234 = vadd.f32 %v73, %v233
  %v235 = vpop.f32.mrf.mxu0
  %v236 = vpop.f32.mrf.mxu0
  %v237 = vadd.f32 %v73, %v236
  %v238 = vpop.f32.mrf.mxu0
  %239 = vmatprep.mubr.bf16.mxu0 0
  %240 = vmatmul.mubr.bf16.gmra.mxu0 %v150
  %v241 = vpop.f32.mrf.mxu0
  %v242 = vadd.f32 %v73, %v241
  %v243 = vpop.f32.mrf.mxu0
  %v244 = vpop.f32.mrf.mxu0
  %v245 = vadd.f32 %v73, %v244
  %v246 = vpop.f32.mrf.mxu0
  %247 = vmatprep.mubr.bf16.mxu0 0
  %248 = vmatmul.mubr.bf16.gmra.mxu0 %v153
  %v249 = vpop.f32.mrf.mxu0
  %v250 = vadd.f32 %v73, %v249
  %v251 = vpop.f32.mrf.mxu0
  %v252 = vpop.f32.mrf.mxu0
  %v253 = vadd.f32 %v73, %v252
  %v254 = vpop.f32.mrf.mxu0
  %255 = vdwg.mxu0
  %v256 = vld [vmem:[%s3] sm:$0x1]
  %v257 = vld [vmem:[%s4] sm:$0x1]
  %vm258 = vcmask 64512
  %v259 = vsel %vm258, %v194, 0.0
  %v260 = vsel %vm258, %v197, 0.0
  %v261 = vadd.f32 %v259, %v260
  %v262 = vsel %vm258, %v202, 0.0
  %v263 = vadd.f32 %v261, %v262
  %v264 = vsel %vm258, %v205, 0.0
  %v265 = vadd.f32 %v263, %v264
  %v266 = vsel %vm258, %v210, 0.0
  %v267 = vadd.f32 %v265, %v266
  %v268 = vsel %vm258, %v213, 0.0
  %v269 = vadd.f32 %v267, %v268
  %v270 = vsel %vm258, %v218, 0.0
  %v271 = vadd.f32 %v269, %v270
  %v272 = vsel %vm258, %v221, 0.0
  %v273 = vadd.f32 %v271, %v272
  %v274 = vsel %vm258, %v226, 0.0
  %v275 = vadd.f32 %v273, %v274
  %v276 = vsel %vm258, %v229, 0.0
  %v277 = vadd.f32 %v275, %v276
  %v278 = vsel %vm258, %v234, 0.0
  %v279 = vadd.f32 %v277, %v278
  %v280 = vsel %vm258, %v237, 0.0
  %v281 = vadd.f32 %v279, %v280
  %v282 = vsel %vm258, %v242, 0.0
  %v283 = vadd.f32 %v281, %v282
  %v284 = vsel %vm258, %v245, 0.0
  %v285 = vadd.f32 %v283, %v284
  %v286 = vsel %vm258, %v250, 0.0
  %v287 = vadd.f32 %v285, %v286
  %v288 = vsel %vm258, %v253, 0.0
  %v289 = vadd.f32 %v287, %v288
  %v290 = vrot.slane %v289, 4
  %v291 = vadd.f32 %v289, %v290
  %v292 = vrot.slane %v291, 2
  %v293 = vadd.f32 %v291, %v292
  %v294 = vrot.slane %v293, 1
  %v295 = vadd.f32 %v293, %v294
  %v296 = vmul.f32 %v295, 0.0078125
  %v297 = vsub.f32 %v194, %v296
  %v298 = vsub.f32 %v197, %v296
  %v299 = vsub.f32 %v202, %v296
  %v300 = vsub.f32 %v205, %v296
  %v301 = vsub.f32 %v210, %v296
  %v302 = vsub.f32 %v213, %v296
  %v303 = vsub.f32 %v218, %v296
  %v304 = vsub.f32 %v221, %v296
  %v305 = vsub.f32 %v226, %v296
  %v306 = vsub.f32 %v229, %v296
  %v307 = vsub.f32 %v234, %v296
  %v308 = vsub.f32 %v237, %v296
  %v309 = vsub.f32 %v242, %v296
  %v310 = vsub.f32 %v245, %v296
  %v311 = vsub.f32 %v250, %v296
  %v312 = vsub.f32 %v253, %v296
  %v313 = vmul.f32 %v297, %v297
  %v314 = vmul.f32 %v298, %v298
  %v315 = vmul.f32 %v299, %v299
  %v316 = vmul.f32 %v300, %v300
  %v317 = vmul.f32 %v301, %v301
  %v318 = vmul.f32 %v302, %v302
  %v319 = vmul.f32 %v303, %v303
  %v320 = vmul.f32 %v304, %v304
  %v321 = vmul.f32 %v305, %v305
  %v322 = vmul.f32 %v306, %v306
  %v323 = vmul.f32 %v307, %v307
  %v324 = vmul.f32 %v308, %v308
  %v325 = vmul.f32 %v309, %v309
  %v326 = vmul.f32 %v310, %v310
  %v327 = vmul.f32 %v311, %v311
  %v328 = vmul.f32 %v312, %v312
  %v329 = vsel %vm258, %v313, 0.0
  %v330 = vsel %vm258, %v314, 0.0
  %v331 = vadd.f32 %v329, %v330
  %v332 = vsel %vm258, %v315, 0.0
  %v333 = vadd.f32 %v331, %v332
  %v334 = vsel %vm258, %v316, 0.0
  %v335 = vadd.f32 %v333, %v334
  %v336 = vsel %vm258, %v317, 0.0
  %v337 = vadd.f32 %v335, %v336
  %v338 = vsel %vm258, %v318, 0.0
  %v339 = vadd.f32 %v337, %v338
  %v340 = vsel %vm258, %v319, 0.0
  %v341 = vadd.f32 %v339, %v340
  %v342 = vsel %vm258, %v320, 0.0
  %v343 = vadd.f32 %v341, %v342
  %v344 = vsel %vm258, %v321, 0.0
  %v345 = vadd.f32 %v343, %v344
  %v346 = vsel %vm258, %v322, 0.0
  %v347 = vadd.f32 %v345, %v346
  %v348 = vsel %vm258, %v323, 0.0
  %v349 = vadd.f32 %v347, %v348
  %v350 = vsel %vm258, %v324, 0.0
  %v351 = vadd.f32 %v349, %v350
  %v352 = vsel %vm258, %v325, 0.0
  %v353 = vadd.f32 %v351, %v352
  %v354 = vsel %vm258, %v326, 0.0
  %v355 = vadd.f32 %v353, %v354
  %v356 = vsel %vm258, %v327, 0.0
  %v357 = vadd.f32 %v355, %v356
  %v358 = vsel %vm258, %v328, 0.0
  %v359 = vadd.f32 %v357, %v358
  %v360 = vrot.slane %v359, 4
  %v361 = vadd.f32 %v359, %v360
  %v362 = vrot.slane %v361, 2
  %v363 = vadd.f32 %v361, %v362
  %v364 = vrot.slane %v363, 1
  %v365 = vadd.f32 %v363, %v364
  %v366 = vmul.f32 %v365, 0.0078125
  %v367 = vadd.f32 %v366, 1e-05
  %v368 = vrsqrt.pop %v367
  %v369 = vmul.f32 %v256, %v368
  %v371 = vlaneseq
  %v372 = vshrl.u32 %v371, 7
  %v373 = vsub.s32 0, %v372
  %v374 = vrot.slane %v369, %v373
  %v376 = vmul.f32 %v374, %v297
  %v377 = vmul.f32 %v374, %v298
  %v378 = vmul.f32 %v374, %v299
  %v379 = vmul.f32 %v374, %v300
  %v380 = vmul.f32 %v374, %v301
  %v381 = vmul.f32 %v374, %v302
  %v382 = vmul.f32 %v374, %v303
  %v383 = vmul.f32 %v374, %v304
  %v384 = vmul.f32 %v374, %v305
  %v385 = vmul.f32 %v374, %v306
  %v386 = vmul.f32 %v374, %v307
  %v387 = vmul.f32 %v374, %v308
  %v388 = vmul.f32 %v374, %v309
  %v389 = vmul.f32 %v374, %v310
  %v390 = vmul.f32 %v374, %v311
  %v391 = vmul.f32 %v374, %v312
  %v393 = vlaneseq
  %v394 = vshrl.u32 %v393, 7
  %v395 = vsub.s32 0, %v394
  %v396 = vrot.slane %v257, %v395
  %v398 = vadd.f32 %v376, %v396
  %v399 = vadd.f32 %v377, %v396
  %v400 = vadd.f32 %v378, %v396
  %v401 = vadd.f32 %v379, %v396
  %v402 = vadd.f32 %v380, %v396
  %v403 = vadd.f32 %v381, %v396
  %v404 = vadd.f32 %v382, %v396
  %v405 = vadd.f32 %v383, %v396
  %v406 = vadd.f32 %v384, %v396
  %v407 = vadd.f32 %v385, %v396
  %v408 = vadd.f32 %v386, %v396
  %v409 = vadd.f32 %v387, %v396
  %v410 = vadd.f32 %v388, %v396
  %v411 = vadd.f32 %v389, %v396
  %v412 = vadd.f32 %v390, %v396
  %v413 = vadd.f32 %v391, %v396
  %vm414 = vcmp.ge.f32.partialorder %v398, 0.0
  %vm415 = vcmp.ge.f32.partialorder %v399, 0.0
  %vm416 = vcmp.ge.f32.partialorder %v400, 0.0
  %vm417 = vcmp.ge.f32.partialorder %v401, 0.0
  %vm418 = vcmp.ge.f32.partialorder %v402, 0.0
  %vm419 = vcmp.ge.f32.partialorder %v403, 0.0
  %vm420 = vcmp.ge.f32.partialorder %v404, 0.0
  %vm421 = vcmp.ge.f32.partialorder %v405, 0.0
  %vm422 = vcmp.ge.f32.partialorder %v406, 0.0
  %vm423 = vcmp.ge.f32.partialorder %v407, 0.0
  %vm424 = vcmp.ge.f32.partialorder %v408, 0.0
  %vm425 = vcmp.ge.f32.partialorder %v409, 0.0
  %vm426 = vcmp.ge.f32.partialorder %v410, 0.0
  %vm427 = vcmp.ge.f32.partialorder %v411, 0.0
  %vm428 = vcmp.ge.f32.partialorder %v412, 0.0
  %vm429 = vcmp.ge.f32.partialorder %v413, 0.0
  %v430 = vmul.f32 %v398, 0.2
  %v431 = vmul.f32 %v399, 0.2
  %v432 = vmul.f32 %v400, 0.2
  %v433 = vmul.f32 %v401, 0.2
  %v434 = vmul.f32 %v402, 0.2
  %v435 = vmul.f32 %v403, 0.2
  %v436 = vmul.f32 %v404, 0.2
  %v437 = vmul.f32 %v405, 0.2
  %v438 = vmul.f32 %v406, 0.2
  %v439 = vmul.f32 %v407, 0.2
  %v440 = vmul.f32 %v408, 0.2
  %v441 = vmul.f32 %v409, 0.2
  %v442 = vmul.f32 %v410, 0.2
  %v443 = vmul.f32 %v411, 0.2
  %v444 = vmul.f32 %v412, 0.2
  %v445 = vmul.f32 %v413, 0.2
  %v446 = vsel %vm414, %v398, %v430
  %v447 = vsel %vm415, %v399, %v431
  %v448 = vsel %vm416, %v400, %v432
  %v449 = vsel %vm417, %v401, %v433
  %v450 = vsel %vm418, %v402, %v434
  %v451 = vsel %vm419, %v403, %v435
  %v452 = vsel %vm420, %v404, %v436
  %v453 = vsel %vm421, %v405, %v437
  %v454 = vsel %vm422, %v406, %v438
  %v455 = vsel %vm423, %v407, %v439
  %v456 = vsel %vm424, %v408, %v440
  %v457 = vsel %vm425, %v409, %v441
  %v458 = vsel %vm426, %v410, %v442
  %v459 = vsel %vm427, %v411, %v443
  %v460 = vsel %vm428, %v412, %v444
  %v461 = vsel %vm429, %v413, %v445
  %v462 = vld [vmem:[%s5] sm:$0xf]
  %v463 = vld [vmem:[%s5 + $0x4] sm:$0xf]
  %v464 = vld [vmem:[%s5 + $0x8] sm:$0xf]
  %v465 = vld [vmem:[%s5 + $0xc] sm:$0xf]
  %v466 = vld [vmem:[%s5 + $0x10] sm:$0xf]
  %v467 = vld [vmem:[%s5 + $0x14] sm:$0xf]
  %v468 = vld [vmem:[%s5 + $0x18] sm:$0xf]
  %v469 = vld [vmem:[%s5 + $0x1c] sm:$0xf]
  %v470 = vld [vmem:[%s5 + $0x20] sm:$0xf]
  %v471 = vld [vmem:[%s5 + $0x24] sm:$0xf]
  %v472 = vld [vmem:[%s5 + $0x28] sm:$0xf]
  %v473 = vld [vmem:[%s5 + $0x2c] sm:$0xf]
  %v474 = vld [vmem:[%s5 + $0x30] sm:$0xf]
  %v475 = vld [vmem:[%s5 + $0x34] sm:$0xf]
  %v476 = vld [vmem:[%s5 + $0x38] sm:$0xf]
  %v477 = vld [vmem:[%s5 + $0x3c] sm:$0xf]
  %v478 = vld [vmem:[%s5 + $0x40] sm:$0xf]
  %v479 = vld [vmem:[%s5 + $0x44] sm:$0xf]
  %v480 = vld [vmem:[%s5 + $0x48] sm:$0xf]
  %v481 = vld [vmem:[%s5 + $0x4c] sm:$0xf]
  %v482 = vld [vmem:[%s5 + $0x50] sm:$0xf]
  %v483 = vld [vmem:[%s5 + $0x54] sm:$0xf]
  %v484 = vld [vmem:[%s5 + $0x58] sm:$0xf]
  %v485 = vld [vmem:[%s5 + $0x5c] sm:$0xf]
  %v486 = vld [vmem:[%s5 + $0x60] sm:$0xf]
  %v487 = vld [vmem:[%s5 + $0x64] sm:$0xf]
  %v488 = vld [vmem:[%s5 + $0x68] sm:$0xf]
  %v489 = vld [vmem:[%s5 + $0x6c] sm:$0xf]
  %v490 = vld [vmem:[%s5 + $0x70] sm:$0xf]
  %v491 = vld [vmem:[%s5 + $0x74] sm:$0xf]
  %v492 = vld [vmem:[%s5 + $0x78] sm:$0xf]
  %v493 = vld [vmem:[%s5 + $0x7c] sm:$0xf]
  %v494 = vld [vmem:[%s5 + $0x80] sm:$0xf]
  %v495 = vld [vmem:[%s5 + $0x84] sm:$0xf]
  %v496 = vld [vmem:[%s5 + $0x88] sm:$0xf]
  %v497 = vld [vmem:[%s5 + $0x8c] sm:$0xf]
  %v498 = vpack.c.bf16 %v447, %v446
  %v499 = vpack.c.bf16 %v449, %v448
  %v500 = vpack.c.bf16 %v451, %v450
  %v501 = vpack.c.bf16 %v453, %v452
  %v502 = vpack.c.bf16 %v455, %v454
  %v503 = vpack.c.bf16 %v457, %v456
  %v504 = vpack.c.bf16 %v459, %v458
  %v505 = vpack.c.bf16 %v461, %v460
  %v542 = vunpack.c.l.b16 %v462
  %v543 = vunpack.c.l.b16 %v463
  %v544 = vunpack.c.l.b16 %v464
  %v545 = vunpack.c.l.b16 %v465
  %v546 = vunpack.c.l.b16 %v466
  %v547 = vunpack.c.l.b16 %v467
  %v548 = vunpack.c.l.b16 %v468
  %v549 = vunpack.c.l.b16 %v469
  %v550 = vunpack.c.l.b16 %v470
  %v551 = vunpack.c.l.b16 %v471
  %v552 = vunpack.c.l.b16 %v472
  %v553 = vunpack.c.l.b16 %v473
  %v554 = vunpack.c.l.b16 %v474
  %v555 = vunpack.c.l.b16 %v475
  %v556 = vunpack.c.l.b16 %v476
  %v557 = vunpack.c.l.b16 %v477
  %v558 = vunpack.c.l.b16 %v478
  %v559 = vunpack.c.l.b16 %v479
  %v560 = vunpack.c.l.b16 %v480
  %v561 = vunpack.c.l.b16 %v481
  %v562 = vunpack.c.l.b16 %v482
  %v563 = vunpack.c.l.b16 %v483
  %v564 = vunpack.c.l.b16 %v484
  %v565 = vunpack.c.l.b16 %v485
  %v566 = vunpack.c.l.b16 %v486
  %v567 = vunpack.c.l.b16 %v487
  %v568 = vunpack.c.l.b16 %v488
  %v569 = vunpack.c.l.b16 %v489
  %v570 = vunpack.c.l.b16 %v490
  %v571 = vunpack.c.l.b16 %v491
  %v572 = vunpack.c.l.b16 %v492
  %v573 = vunpack.c.l.b16 %v493
  %v574 = vunpack.c.l.b16 %v494
  %v575 = vunpack.c.l.b16 %v495
  %v576 = vunpack.c.l.b16 %v496
  %v577 = vunpack.c.l.b16 %v497
  %v578 = vpack.c.b16 %v543, %v542
  %v579 = vpack.c.b16 %v545, %v544
  %v580 = vpack.c.b16 %v547, %v546
  %v581 = vpack.c.b16 %v549, %v548
  %v582 = vpack.c.b16 %v551, %v550
  %v583 = vpack.c.b16 %v553, %v552
  %v584 = vpack.c.b16 %v555, %v554
  %v585 = vpack.c.b16 %v557, %v556
  %v586 = vpack.c.b16 %v559, %v558
  %v587 = vpack.c.b16 %v561, %v560
  %v588 = vpack.c.b16 %v563, %v562
  %v589 = vpack.c.b16 %v565, %v564
  %v590 = vpack.c.b16 %v567, %v566
  %v591 = vpack.c.b16 %v569, %v568
  %v592 = vpack.c.b16 %v571, %v570
  %v593 = vpack.c.b16 %v573, %v572
  %v594 = vpack.c.b16 %v575, %v574
  %v595 = vpack.c.b16 %v577, %v576
  %614 = vmatprep.subr.bf16.mxu0 0
  %615 = vmatpush1.bf16.msra.mxu0 %v505
  %616 = vmatprep.subr.bf16.mxu0 0
  %617 = vmatpush1.bf16.msra.mxu0 %v504
  %618 = vmatprep.subr.bf16.mxu0 0
  %619 = vmatpush1.bf16.msra.mxu0 %v503
  %620 = vmatprep.subr.bf16.mxu0 0
  %621 = vmatpush1.bf16.msra.mxu0 %v502
  %622 = vmatprep.subr.bf16.mxu0 0
  %623 = vmatpush1.bf16.msra.mxu0 %v501
  %624 = vmatprep.subr.bf16.mxu0 0
  %625 = vmatpush1.bf16.msra.mxu0 %v500
  %626 = vmatprep.subr.bf16.mxu0 0
  %627 = vmatpush1.bf16.msra.mxu0 %v499
  %628 = vmatprep.subr.bf16.mxu0 0
  %629 = vmatpush1.bf16.msra.mxu0 %v498
  %630 = vmatprep.subr.bf16.mxu0 0
  %631 = vmatpush2.bf16.msra.mxu0 0
  %632 = vmatprep.subr.bf16.mxu0 0
  %633 = vmatpush2.bf16.msra.mxu0 0
  %634 = vmatprep.subr.bf16.mxu0 0
  %635 = vmatpush2.bf16.msra.mxu0 0
  %636 = vmatprep.subr.bf16.mxu0 0
  %637 = vmatpush2.bf16.msra.mxu0 0
  %638 = vmatprep.subr.bf16.mxu0 0
  %639 = vmatpush2.bf16.msra.mxu0 0
  %640 = vmatprep.subr.bf16.mxu0 0
  %641 = vmatpush2.bf16.msra.mxu0 0
  %642 = vmatprep.subr.bf16.mxu0 0
  %643 = vmatpush2.bf16.msra.mxu0 0
  %644 = vmatprep.subr.bf16.mxu0 0
  %645 = vmatpush2.bf16.msra.mxu0 0
  %646 = vmatprep.mubr.bf16.mxu0 0
  %647 = vmatmul.mubr.bf16.gmra.mxu0 %v578
  %v648 = vpop.f32.mrf.mxu0
  %v649 = vadd.f32 0.0, %v648
  %v650 = vpop.f32.mrf.mxu0
  %v651 = vpop.f32.mrf.mxu0
  %v652 = vadd.f32 0.0, %v651
  %v653 = vpop.f32.mrf.mxu0
  %654 = vmatprep.mubr.bf16.mxu0 0
  %655 = vmatmul.mubr.bf16.gmra.mxu0 %v579
  %v656 = vpop.f32.mrf.mxu0
  %v657 = vadd.f32 0.0, %v656
  %v658 = vpop.f32.mrf.mxu0
  %v659 = vpop.f32.mrf.mxu0
  %v660 = vadd.f32 0.0, %v659
  %v661 = vpop.f32.mrf.mxu0
  %662 = vmatprep.mubr.bf16.mxu0 0
  %663 = vmatmul.mubr.bf16.gmra.mxu0 %v580
  %v664 = vpop.f32.mrf.mxu0
  %v665 = vadd.f32 0.0, %v664
  %v666 = vpop.f32.mrf.mxu0
  %v667 = vpop.f32.mrf.mxu0
  %v668 = vadd.f32 0.0, %v667
  %v669 = vpop.f32.mrf.mxu0
  %670 = vmatprep.mubr.bf16.mxu0 0
  %671 = vmatmul.mubr.bf16.gmra.mxu0 %v581
  %v672 = vpop.f32.mrf.mxu0
  %v673 = vadd.f32 0.0, %v672
  %v674 = vpop.f32.mrf.mxu0
  %v675 = vpop.f32.mrf.mxu0
  %v676 = vadd.f32 0.0, %v675
  %v677 = vpop.f32.mrf.mxu0
  %678 = vmatprep.mubr.bf16.mxu0 0
  %679 = vmatmul.mubr.bf16.gmra.mxu0 %v582
  %v680 = vpop.f32.mrf.mxu0
  %v681 = vadd.f32 0.0, %v680
  %v682 = vpop.f32.mrf.mxu0
  %v683 = vpop.f32.mrf.mxu0
  %v684 = vadd.f32 0.0, %v683
  %v685 = vpop.f32.mrf.mxu0
  %686 = vmatprep.mubr.bf16.mxu0 0
  %687 = vmatmul.mubr.bf16.gmra.mxu0 %v583
  %v688 = vpop.f32.mrf.mxu0
  %v689 = vadd.f32 0.0, %v688
  %v690 = vpop.f32.mrf.mxu0
  %v691 = vpop.f32.mrf.mxu0
  %v692 = vadd.f32 0.0, %v691
  %v693 = vpop.f32.mrf.mxu0
  %694 = vmatprep.mubr.bf16.mxu0 0
  %695 = vmatmul.mubr.bf16.gmra.mxu0 %v584
  %v696 = vpop.f32.mrf.mxu0
  %v697 = vadd.f32 0.0, %v696
  %v698 = vpop.f32.mrf.mxu0
  %v699 = vpop.f32.mrf.mxu0
  %v700 = vadd.f32 0.0, %v699
  %v701 = vpop.f32.mrf.mxu0
  %702 = vmatprep.mubr.bf16.mxu0 0
  %703 = vmatmul.mubr.bf16.gmra.mxu0 %v585
  %v704 = vpop.f32.mrf.mxu0
  %v705 = vadd.f32 0.0, %v704
  %v706 = vpop.f32.mrf.mxu0
  %v707 = vpop.f32.mrf.mxu0
  %v708 = vadd.f32 0.0, %v707
  %v709 = vpop.f32.mrf.mxu0
  %710 = vmatprep.mubr.bf16.mxu0 0
  %711 = vmatmul.mubr.bf16.gmra.mxu0 %v586
  %v712 = vpop.f32.mrf.mxu0
  %v713 = vadd.f32 0.0, %v712
  %v714 = vpop.f32.mrf.mxu0
  %v715 = vpop.f32.mrf.mxu0
  %v716 = vadd.f32 0.0, %v715
  %v717 = vpop.f32.mrf.mxu0
  %718 = vmatprep.mubr.bf16.mxu0 0
  %719 = vmatmul.mubr.bf16.gmra.mxu0 %v587
  %v720 = vpop.f32.mrf.mxu0
  %v721 = vadd.f32 0.0, %v720
  %v722 = vpop.f32.mrf.mxu0
  %v723 = vpop.f32.mrf.mxu0
  %v724 = vadd.f32 0.0, %v723
  %v725 = vpop.f32.mrf.mxu0
  %726 = vmatprep.mubr.bf16.mxu0 0
  %727 = vmatmul.mubr.bf16.gmra.mxu0 %v588
  %v728 = vpop.f32.mrf.mxu0
  %v729 = vadd.f32 0.0, %v728
  %v730 = vpop.f32.mrf.mxu0
  %v731 = vpop.f32.mrf.mxu0
  %v732 = vadd.f32 0.0, %v731
  %v733 = vpop.f32.mrf.mxu0
  %734 = vmatprep.mubr.bf16.mxu0 0
  %735 = vmatmul.mubr.bf16.gmra.mxu0 %v589
  %v736 = vpop.f32.mrf.mxu0
  %v737 = vadd.f32 0.0, %v736
  %v738 = vpop.f32.mrf.mxu0
  %v739 = vpop.f32.mrf.mxu0
  %v740 = vadd.f32 0.0, %v739
  %v741 = vpop.f32.mrf.mxu0
  %742 = vmatprep.mubr.bf16.mxu0 0
  %743 = vmatmul.mubr.bf16.gmra.mxu0 %v590
  %v744 = vpop.f32.mrf.mxu0
  %v745 = vadd.f32 0.0, %v744
  %v746 = vpop.f32.mrf.mxu0
  %v747 = vpop.f32.mrf.mxu0
  %v748 = vadd.f32 0.0, %v747
  %v749 = vpop.f32.mrf.mxu0
  %750 = vmatprep.mubr.bf16.mxu0 0
  %751 = vmatmul.mubr.bf16.gmra.mxu0 %v591
  %v752 = vpop.f32.mrf.mxu0
  %v753 = vadd.f32 0.0, %v752
  %v754 = vpop.f32.mrf.mxu0
  %v755 = vpop.f32.mrf.mxu0
  %v756 = vadd.f32 0.0, %v755
  %v757 = vpop.f32.mrf.mxu0
  %758 = vmatprep.mubr.bf16.mxu0 0
  %759 = vmatmul.mubr.bf16.gmra.mxu0 %v592
  %v760 = vpop.f32.mrf.mxu0
  %v761 = vadd.f32 0.0, %v760
  %v762 = vpop.f32.mrf.mxu0
  %v763 = vpop.f32.mrf.mxu0
  %v764 = vadd.f32 0.0, %v763
  %v765 = vpop.f32.mrf.mxu0
  %766 = vmatprep.mubr.bf16.mxu0 0
  %767 = vmatmul.mubr.bf16.gmra.mxu0 %v593
  %v768 = vpop.f32.mrf.mxu0
  %v769 = vadd.f32 0.0, %v768
  %v770 = vpop.f32.mrf.mxu0
  %v771 = vpop.f32.mrf.mxu0
  %v772 = vadd.f32 0.0, %v771
  %v773 = vpop.f32.mrf.mxu0
  %774 = vmatprep.mubr.bf16.mxu0 0
  %775 = vmatmul.mubr.bf16.gmra.mxu0 %v594
  %v776 = vpop.f32.mrf.mxu0
  %v777 = vadd.f32 0.0, %v776
  %v778 = vpop.f32.mrf.mxu0
  %v779 = vpop.f32.mrf.mxu0
  %v780 = vadd.f32 0.0, %v779
  %v781 = vpop.f32.mrf.mxu0
  %782 = vmatprep.mubr.bf16.mxu0 0
  %783 = vmatmul.mubr.bf16.gmra.mxu0 %v595
  %v784 = vpop.f32.mrf.mxu0
  %v785 = vadd.f32 0.0, %v784
  %v786 = vpop.f32.mrf.mxu0
  %v787 = vpop.f32.mrf.mxu0
  %v788 = vadd.f32 0.0, %v787
  %v789 = vpop.f32.mrf.mxu0
  %790 = vdwg.mxu0
  %v791 = vpack.c.bf16 %v652, %v649
  %v792 = vpack.c.bf16 %v660, %v657
  %v793 = vpack.c.bf16 %v668, %v665
  %v794 = vpack.c.bf16 %v676, %v673
  %v795 = vpack.c.bf16 %v684, %v681
  %v796 = vpack.c.bf16 %v692, %v689
  %v797 = vpack.c.bf16 %v700, %v697
  %v798 = vpack.c.bf16 %v708, %v705
  %v799 = vpack.c.bf16 %v716, %v713
  %v800 = vpack.c.bf16 %v724, %v721
  %v801 = vpack.c.bf16 %v732, %v729
  %v802 = vpack.c.bf16 %v740, %v737
  %v803 = vpack.c.bf16 %v748, %v745
  %v804 = vpack.c.bf16 %v756, %v753
  %v805 = vpack.c.bf16 %v764, %v761
  %v806 = vpack.c.bf16 %v772, %v769
  %v807 = vpack.c.bf16 %v780, %v777
  %v808 = vpack.c.bf16 %v788, %v785
  %v809 = vld [vmem:[%s6] sm:$0xf]
  %s810 = scalar_lea.vmem %s6, 4
  %v811 = vld [vmem:[%s810] sm:$0xf]
  %v813 = vsel %vm258, %v793, 0
  %v816 = vsel %vm258, %v794, 0
  %vm818 = vcmask 1043456
  %v820 = vsel %vm818, %v811, 0
  %822 = vmatprep.subr.bf16.mxu0 0
  %823 = vmatpush1.bf16.msra.mxu0 0
  %824 = vmatprep.subr.bf16.mxu0 0
  %825 = vmatpush1.bf16.msra.mxu0 0
  %826 = vmatprep.subr.bf16.mxu0 0
  %827 = vmatpush1.bf16.msra.mxu0 0
  %828 = vmatprep.subr.bf16.mxu0 0
  %829 = vmatpush1.bf16.msra.mxu0 0
  %830 = vmatprep.subr.bf16.mxu0 0
  %831 = vmatpush1.bf16.msra.mxu0 0
  %832 = vmatprep.subr.bf16.mxu0 0
  %833 = vmatpush1.bf16.msra.mxu0 0
  %834 = vmatprep.subr.bf16.mxu0 0
  %835 = vmatpush1.bf16.msra.mxu0 0
  %836 = vmatprep.subr.bf16.mxu0 0
  %837 = vmatpush1.bf16.msra.mxu0 %v820
  %838 = vmatprep.subr.bf16.mxu0 0
  %839 = vmatpush2.bf16.msra.mxu0 0
  %840 = vmatprep.subr.bf16.mxu0 0
  %841 = vmatpush2.bf16.msra.mxu0 0
  %842 = vmatprep.subr.bf16.mxu0 0
  %843 = vmatpush2.bf16.msra.mxu0 0
  %844 = vmatprep.subr.bf16.mxu0 0
  %845 = vmatpush2.bf16.msra.mxu0 0
  %846 = vmatprep.subr.bf16.mxu0 0
  %847 = vmatpush2.bf16.msra.mxu0 0
  %848 = vmatprep.subr.bf16.mxu0 0
  %849 = vmatpush2.bf16.msra.mxu0 0
  %850 = vmatprep.subr.bf16.mxu0 0
  %851 = vmatpush2.bf16.msra.mxu0 0
  %852 = vmatprep.subr.bf16.mxu0 0
  %853 = vmatpush2.bf16.msra.mxu0 0
  %854 = vmatprep.mubr.bf16.mxu0 0
  %855 = vmatmul.mubr.bf16.gmra.mxu0 %v813
  %v856 = vpop.f32.mrf.mxu0
  %v857 = vadd.f32 0.0, %v856
  %v858 = vpop.f32.mrf.mxu0
  %v859 = vpop.f32.mrf.mxu0
  %v860 = vadd.f32 0.0, %v859
  %v861 = vpop.f32.mrf.mxu0
  %862 = vmatprep.mubr.bf16.mxu0 0
  %863 = vmatmul.mubr.bf16.gmra.mxu0 %v816
  %v864 = vpop.f32.mrf.mxu0
  %v865 = vadd.f32 0.0, %v864
  %v866 = vpop.f32.mrf.mxu0
  %v867 = vpop.f32.mrf.mxu0
  %v868 = vadd.f32 0.0, %v867
  %v869 = vpop.f32.mrf.mxu0
  %870 = vdwg.mxu0
  %v872 = vsel %vm258, %v791, 0
  %v875 = vsel %vm258, %v792, 0
  %v878 = vsel %vm818, %v809, 0
  %880 = vmatprep.subr.bf16.mxu0 0
  %881 = vmatpush1.bf16.msra.mxu0 0
  %882 = vmatprep.subr.bf16.mxu0 0
  %883 = vmatpush1.bf16.msra.mxu0 0
  %884 = vmatprep.subr.bf16.mxu0 0
  %885 = vmatpush1.bf16.msra.mxu0 0
  %886 = vmatprep.subr.bf16.mxu0 0
  %887 = vmatpush1.bf16.msra.mxu0 0
  %888 = vmatprep.subr.bf16.mxu0 0
  %889 = vmatpush1.bf16.msra.mxu0 0
  %890 = vmatprep.subr.bf16.mxu0 0
  %891 = vmatpush1.bf16.msra.mxu0 0
  %892 = vmatprep.subr.bf16.mxu0 0
  %893 = vmatpush1.bf16.msra.mxu0 0
  %894 = vmatprep.subr.bf16.mxu0 0
  %895 = vmatpush1.bf16.msra.mxu0 %v878
  %896 = vmatprep.subr.bf16.mxu0 0
  %897 = vmatpush2.bf16.msra.mxu0 0
  %898 = vmatprep.subr.bf16.mxu0 0
  %899 = vmatpush2.bf16.msra.mxu0 0
  %900 = vmatprep.subr.bf16.mxu0 0
  %901 = vmatpush2.bf16.msra.mxu0 0
  %902 = vmatprep.subr.bf16.mxu0 0
  %903 = vmatpush2.bf16.msra.mxu0 0
  %904 = vmatprep.subr.bf16.mxu0 0
  %905 = vmatpush2.bf16.msra.mxu0 0
  %906 = vmatprep.subr.bf16.mxu0 0
  %907 = vmatpush2.bf16.msra.mxu0 0
  %908 = vmatprep.subr.bf16.mxu0 0
  %909 = vmatpush2.bf16.msra.mxu0 0
  %910 = vmatprep.subr.bf16.mxu0 0
  %911 = vmatpush2.bf16.msra.mxu0 0
  %912 = vmatprep.mubr.bf16.mxu0 0
  %913 = vmatmul.mubr.bf16.gmra.mxu0 %v872
  %v914 = vpop.f32.mrf.mxu0
  %v915 = vadd.f32 %v857, %v914
  %v916 = vpop.f32.mrf.mxu0
  %v917 = vpop.f32.mrf.mxu0
  %v918 = vadd.f32 %v860, %v917
  %v919 = vpop.f32.mrf.mxu0
  %920 = vmatprep.mubr.bf16.mxu0 0
  %921 = vmatmul.mubr.bf16.gmra.mxu0 %v875
  %v922 = vpop.f32.mrf.mxu0
  %v923 = vadd.f32 %v865, %v922
  %v924 = vpop.f32.mrf.mxu0
  %v925 = vpop.f32.mrf.mxu0
  %v926 = vadd.f32 %v868, %v925
  %v927 = vpop.f32.mrf.mxu0
  %928 = vdwg.mxu0
  %s929 = scalar_lea.vmem %s6, 8
  %v930 = vld [vmem:[%s929] sm:$0xf]
  %v932 = vsel %vm258, %v795, 0
  %v935 = vsel %vm258, %v796, 0
  %v938 = vsel %vm818, %v930, 0
  %940 = vmatprep.subr.bf16.mxu0 0
  %941 = vmatpush1.bf16.msra.mxu0 0
  %942 = vmatprep.subr.bf16.mxu0 0
  %943 = vmatpush1.bf16.msra.mxu0 0
  %944 = vmatprep.subr.bf16.mxu0 0
  %945 = vmatpush1.bf16.msra.mxu0 0
  %946 = vmatprep.subr.bf16.mxu0 0
  %947 = vmatpush1.bf16.msra.mxu0 0
  %948 = vmatprep.subr.bf16.mxu0 0
  %949 = vmatpush1.bf16.msra.mxu0 0
  %950 = vmatprep.subr.bf16.mxu0 0
  %951 = vmatpush1.bf16.msra.mxu0 0
  %952 = vmatprep.subr.bf16.mxu0 0
  %953 = vmatpush1.bf16.msra.mxu0 0
  %954 = vmatprep.subr.bf16.mxu0 0
  %955 = vmatpush1.bf16.msra.mxu0 %v938
  %956 = vmatprep.subr.bf16.mxu0 0
  %957 = vmatpush2.bf16.msra.mxu0 0
  %958 = vmatprep.subr.bf16.mxu0 0
  %959 = vmatpush2.bf16.msra.mxu0 0
  %960 = vmatprep.subr.bf16.mxu0 0
  %961 = vmatpush2.bf16.msra.mxu0 0
  %962 = vmatprep.subr.bf16.mxu0 0
  %963 = vmatpush2.bf16.msra.mxu0 0
  %964 = vmatprep.subr.bf16.mxu0 0
  %965 = vmatpush2.bf16.msra.mxu0 0
  %966 = vmatprep.subr.bf16.mxu0 0
  %967 = vmatpush2.bf16.msra.mxu0 0
  %968 = vmatprep.subr.bf16.mxu0 0
  %969 = vmatpush2.bf16.msra.mxu0 0
  %970 = vmatprep.subr.bf16.mxu0 0
  %971 = vmatpush2.bf16.msra.mxu0 0
  %972 = vmatprep.mubr.bf16.mxu0 0
  %973 = vmatmul.mubr.bf16.gmra.mxu0 %v932
  %v974 = vpop.f32.mrf.mxu0
  %v975 = vadd.f32 0.0, %v974
  %v976 = vpop.f32.mrf.mxu0
  %v977 = vpop.f32.mrf.mxu0
  %v978 = vadd.f32 0.0, %v977
  %v979 = vpop.f32.mrf.mxu0
  %980 = vmatprep.mubr.bf16.mxu0 0
  %981 = vmatmul.mubr.bf16.gmra.mxu0 %v935
  %v982 = vpop.f32.mrf.mxu0
  %v983 = vadd.f32 0.0, %v982
  %v984 = vpop.f32.mrf.mxu0
  %v985 = vpop.f32.mrf.mxu0
  %v986 = vadd.f32 0.0, %v985
  %v987 = vpop.f32.mrf.mxu0
  %988 = vdwg.mxu0
  %v989 = vadd.f32 %v915, %v975
  %v990 = vadd.f32 %v918, %v978
  %v991 = vadd.f32 %v923, %v983
  %v992 = vadd.f32 %v926, %v986
  %s993 = scalar_lea.vmem %s6, 12
  %v994 = vld [vmem:[%s993] sm:$0xf]
  %v996 = vsel %vm258, %v797, 0
  %v999 = vsel %vm258, %v798, 0
  %v1002 = vsel %vm818, %v994, 0
  %1004 = vmatprep.subr.bf16.mxu0 0
  %1005 = vmatpush1.bf16.msra.mxu0 0
  %1006 = vmatprep.subr.bf16.mxu0 0
  %1007 = vmatpush1.bf16.msra.mxu0 0
  %1008 = vmatprep.subr.bf16.mxu0 0
  %1009 = vmatpush1.bf16.msra.mxu0 0
  %1010 = vmatprep.subr.bf16.mxu0 0
  %1011 = vmatpush1.bf16.msra.mxu0 0
  %1012 = vmatprep.subr.bf16.mxu0 0
  %1013 = vmatpush1.bf16.msra.mxu0 0
  %1014 = vmatprep.subr.bf16.mxu0 0
  %1015 = vmatpush1.bf16.msra.mxu0 0
  %1016 = vmatprep.subr.bf16.mxu0 0
  %1017 = vmatpush1.bf16.msra.mxu0 0
  %1018 = vmatprep.subr.bf16.mxu0 0
  %1019 = vmatpush1.bf16.msra.mxu0 %v1002
  %1020 = vmatprep.subr.bf16.mxu0 0
  %1021 = vmatpush2.bf16.msra.mxu0 0
  %1022 = vmatprep.subr.bf16.mxu0 0
  %1023 = vmatpush2.bf16.msra.mxu0 0
  %1024 = vmatprep.subr.bf16.mxu0 0
  %1025 = vmatpush2.bf16.msra.mxu0 0
  %1026 = vmatprep.subr.bf16.mxu0 0
  %1027 = vmatpush2.bf16.msra.mxu0 0
  %1028 = vmatprep.subr.bf16.mxu0 0
  %1029 = vmatpush2.bf16.msra.mxu0 0
  %1030 = vmatprep.subr.bf16.mxu0 0
  %1031 = vmatpush2.bf16.msra.mxu0 0
  %1032 = vmatprep.subr.bf16.mxu0 0
  %1033 = vmatpush2.bf16.msra.mxu0 0
  %1034 = vmatprep.subr.bf16.mxu0 0
  %1035 = vmatpush2.bf16.msra.mxu0 0
  %1036 = vmatprep.mubr.bf16.mxu0 0
  %1037 = vmatmul.mubr.bf16.gmra.mxu0 %v996
  %v1038 = vpop.f32.mrf.mxu0
  %v1039 = vadd.f32 0.0, %v1038
  %v1040 = vpop.f32.mrf.mxu0
  %v1041 = vpop.f32.mrf.mxu0
  %v1042 = vadd.f32 0.0, %v1041
  %v1043 = vpop.f32.mrf.mxu0
  %1044 = vmatprep.mubr.bf16.mxu0 0
  %1045 = vmatmul.mubr.bf16.gmra.mxu0 %v999
  %v1046 = vpop.f32.mrf.mxu0
  %v1047 = vadd.f32 0.0, %v1046
  %v1048 = vpop.f32.mrf.mxu0
  %v1049 = vpop.f32.mrf.mxu0
  %v1050 = vadd.f32 0.0, %v1049
  %v1051 = vpop.f32.mrf.mxu0
  %1052 = vdwg.mxu0
  %v1053 = vadd.f32 %v989, %v1039
  %v1054 = vadd.f32 %v990, %v1042
  %v1055 = vadd.f32 %v991, %v1047
  %v1056 = vadd.f32 %v992, %v1050
  %s1057 = scalar_lea.vmem %s6, 16
  %v1058 = vld [vmem:[%s1057] sm:$0xf]
  %v1060 = vsel %vm258, %v799, 0
  %v1063 = vsel %vm258, %v800, 0
  %v1066 = vsel %vm818, %v1058, 0
  %1068 = vmatprep.subr.bf16.mxu0 0
  %1069 = vmatpush1.bf16.msra.mxu0 0
  %1070 = vmatprep.subr.bf16.mxu0 0
  %1071 = vmatpush1.bf16.msra.mxu0 0
  %1072 = vmatprep.subr.bf16.mxu0 0
  %1073 = vmatpush1.bf16.msra.mxu0 0
  %1074 = vmatprep.subr.bf16.mxu0 0
  %1075 = vmatpush1.bf16.msra.mxu0 0
  %1076 = vmatprep.subr.bf16.mxu0 0
  %1077 = vmatpush1.bf16.msra.mxu0 0
  %1078 = vmatprep.subr.bf16.mxu0 0
  %1079 = vmatpush1.bf16.msra.mxu0 0
  %1080 = vmatprep.subr.bf16.mxu0 0
  %1081 = vmatpush1.bf16.msra.mxu0 0
  %1082 = vmatprep.subr.bf16.mxu0 0
  %1083 = vmatpush1.bf16.msra.mxu0 %v1066
  %1084 = vmatprep.subr.bf16.mxu0 0
  %1085 = vmatpush2.bf16.msra.mxu0 0
  %1086 = vmatprep.subr.bf16.mxu0 0
  %1087 = vmatpush2.bf16.msra.mxu0 0
  %1088 = vmatprep.subr.bf16.mxu0 0
  %1089 = vmatpush2.bf16.msra.mxu0 0
  %1090 = vmatprep.subr.bf16.mxu0 0
  %1091 = vmatpush2.bf16.msra.mxu0 0
  %1092 = vmatprep.subr.bf16.mxu0 0
  %1093 = vmatpush2.bf16.msra.mxu0 0
  %1094 = vmatprep.subr.bf16.mxu0 0
  %1095 = vmatpush2.bf16.msra.mxu0 0
  %1096 = vmatprep.subr.bf16.mxu0 0
  %1097 = vmatpush2.bf16.msra.mxu0 0
  %1098 = vmatprep.subr.bf16.mxu0 0
  %1099 = vmatpush2.bf16.msra.mxu0 0
  %1100 = vmatprep.mubr.bf16.mxu0 0
  %1101 = vmatmul.mubr.bf16.gmra.mxu0 %v1060
  %v1102 = vpop.f32.mrf.mxu0
  %v1103 = vadd.f32 0.0, %v1102
  %v1104 = vpop.f32.mrf.mxu0
  %v1105 = vpop.f32.mrf.mxu0
  %v1106 = vadd.f32 0.0, %v1105
  %v1107 = vpop.f32.mrf.mxu0
  %1108 = vmatprep.mubr.bf16.mxu0 0
  %1109 = vmatmul.mubr.bf16.gmra.mxu0 %v1063
  %v1110 = vpop.f32.mrf.mxu0
  %v1111 = vadd.f32 0.0, %v1110
  %v1112 = vpop.f32.mrf.mxu0
  %v1113 = vpop.f32.mrf.mxu0
  %v1114 = vadd.f32 0.0, %v1113
  %v1115 = vpop.f32.mrf.mxu0
  %1116 = vdwg.mxu0
  %v1117 = vadd.f32 %v1053, %v1103
  %v1118 = vadd.f32 %v1054, %v1106
  %v1119 = vadd.f32 %v1055, %v1111
  %v1120 = vadd.f32 %v1056, %v1114
  %s1121 = scalar_lea.vmem %s6, 20
  %v1122 = vld [vmem:[%s1121] sm:$0xf]
  %v1124 = vsel %vm258, %v801, 0
  %v1127 = vsel %vm258, %v802, 0
  %v1130 = vsel %vm818, %v1122, 0
  %1132 = vmatprep.subr.bf16.mxu0 0
  %1133 = vmatpush1.bf16.msra.mxu0 0
  %1134 = vmatprep.subr.bf16.mxu0 0
  %1135 = vmatpush1.bf16.msra.mxu0 0
  %1136 = vmatprep.subr.bf16.mxu0 0
  %1137 = vmatpush1.bf16.msra.mxu0 0
  %1138 = vmatprep.subr.bf16.mxu0 0
  %1139 = vmatpush1.bf16.msra.mxu0 0
  %1140 = vmatprep.subr.bf16.mxu0 0
  %1141 = vmatpush1.bf16.msra.mxu0 0
  %1142 = vmatprep.subr.bf16.mxu0 0
  %1143 = vmatpush1.bf16.msra.mxu0 0
  %1144 = vmatprep.subr.bf16.mxu0 0
  %1145 = vmatpush1.bf16.msra.mxu0 0
  %1146 = vmatprep.subr.bf16.mxu0 0
  %1147 = vmatpush1.bf16.msra.mxu0 %v1130
  %1148 = vmatprep.subr.bf16.mxu0 0
  %1149 = vmatpush2.bf16.msra.mxu0 0
  %1150 = vmatprep.subr.bf16.mxu0 0
  %1151 = vmatpush2.bf16.msra.mxu0 0
  %1152 = vmatprep.subr.bf16.mxu0 0
  %1153 = vmatpush2.bf16.msra.mxu0 0
  %1154 = vmatprep.subr.bf16.mxu0 0
  %1155 = vmatpush2.bf16.msra.mxu0 0
  %1156 = vmatprep.subr.bf16.mxu0 0
  %1157 = vmatpush2.bf16.msra.mxu0 0
  %1158 = vmatprep.subr.bf16.mxu0 0
  %1159 = vmatpush2.bf16.msra.mxu0 0
  %1160 = vmatprep.subr.bf16.mxu0 0
  %1161 = vmatpush2.bf16.msra.mxu0 0
  %1162 = vmatprep.subr.bf16.mxu0 0
  %1163 = vmatpush2.bf16.msra.mxu0 0
  %1164 = vmatprep.mubr.bf16.mxu0 0
  %1165 = vmatmul.mubr.bf16.gmra.mxu0 %v1124
  %v1166 = vpop.f32.mrf.mxu0
  %v1167 = vadd.f32 0.0, %v1166
  %v1168 = vpop.f32.mrf.mxu0
  %v1169 = vpop.f32.mrf.mxu0
  %v1170 = vadd.f32 0.0, %v1169
  %v1171 = vpop.f32.mrf.mxu0
  %1172 = vmatprep.mubr.bf16.mxu0 0
  %1173 = vmatmul.mubr.bf16.gmra.mxu0 %v1127
  %v1174 = vpop.f32.mrf.mxu0
  %v1175 = vadd.f32 0.0, %v1174
  %v1176 = vpop.f32.mrf.mxu0
  %v1177 = vpop.f32.mrf.mxu0
  %v1178 = vadd.f32 0.0, %v1177
  %v1179 = vpop.f32.mrf.mxu0
  %1180 = vdwg.mxu0
  %v1181 = vadd.f32 %v1117, %v1167
  %v1182 = vadd.f32 %v1118, %v1170
  %v1183 = vadd.f32 %v1119, %v1175
  %v1184 = vadd.f32 %v1120, %v1178
  %s1185 = scalar_lea.vmem %s6, 24
  %v1186 = vld [vmem:[%s1185] sm:$0xf]
  %v1188 = vsel %vm258, %v803, 0
  %v1191 = vsel %vm258, %v804, 0
  %v1194 = vsel %vm818, %v1186, 0
  %1196 = vmatprep.subr.bf16.mxu0 0
  %1197 = vmatpush1.bf16.msra.mxu0 0
  %1198 = vmatprep.subr.bf16.mxu0 0
  %1199 = vmatpush1.bf16.msra.mxu0 0
  %1200 = vmatprep.subr.bf16.mxu0 0
  %1201 = vmatpush1.bf16.msra.mxu0 0
  %1202 = vmatprep.subr.bf16.mxu0 0
  %1203 = vmatpush1.bf16.msra.mxu0 0
  %1204 = vmatprep.subr.bf16.mxu0 0
  %1205 = vmatpush1.bf16.msra.mxu0 0
  %1206 = vmatprep.subr.bf16.mxu0 0
  %1207 = vmatpush1.bf16.msra.mxu0 0
  %1208 = vmatprep.subr.bf16.mxu0 0
  %1209 = vmatpush1.bf16.msra.mxu0 0
  %1210 = vmatprep.subr.bf16.mxu0 0
  %1211 = vmatpush1.bf16.msra.mxu0 %v1194
  %1212 = vmatprep.subr.bf16.mxu0 0
  %1213 = vmatpush2.bf16.msra.mxu0 0
  %1214 = vmatprep.subr.bf16.mxu0 0
  %1215 = vmatpush2.bf16.msra.mxu0 0
  %1216 = vmatprep.subr.bf16.mxu0 0
  %1217 = vmatpush2.bf16.msra.mxu0 0
  %1218 = vmatprep.subr.bf16.mxu0 0
  %1219 = vmatpush2.bf16.msra.mxu0 0
  %1220 = vmatprep.subr.bf16.mxu0 0
  %1221 = vmatpush2.bf16.msra.mxu0 0
  %1222 = vmatprep.subr.bf16.mxu0 0
  %1223 = vmatpush2.bf16.msra.mxu0 0
  %1224 = vmatprep.subr.bf16.mxu0 0
  %1225 = vmatpush2.bf16.msra.mxu0 0
  %1226 = vmatprep.subr.bf16.mxu0 0
  %1227 = vmatpush2.bf16.msra.mxu0 0
  %1228 = vmatprep.mubr.bf16.mxu0 0
  %1229 = vmatmul.mubr.bf16.gmra.mxu0 %v1188
  %v1230 = vpop.f32.mrf.mxu0
  %v1231 = vadd.f32 0.0, %v1230
  %v1232 = vpop.f32.mrf.mxu0
  %v1233 = vpop.f32.mrf.mxu0
  %v1234 = vadd.f32 0.0, %v1233
  %v1235 = vpop.f32.mrf.mxu0
  %1236 = vmatprep.mubr.bf16.mxu0 0
  %1237 = vmatmul.mubr.bf16.gmra.mxu0 %v1191
  %v1238 = vpop.f32.mrf.mxu0
  %v1239 = vadd.f32 0.0, %v1238
  %v1240 = vpop.f32.mrf.mxu0
  %v1241 = vpop.f32.mrf.mxu0
  %v1242 = vadd.f32 0.0, %v1241
  %v1243 = vpop.f32.mrf.mxu0
  %1244 = vdwg.mxu0
  %v1245 = vadd.f32 %v1181, %v1231
  %v1246 = vadd.f32 %v1182, %v1234
  %v1247 = vadd.f32 %v1183, %v1239
  %v1248 = vadd.f32 %v1184, %v1242
  %s1249 = scalar_lea.vmem %s6, 28
  %v1250 = vld [vmem:[%s1249] sm:$0xf]
  %v1252 = vsel %vm258, %v805, 0
  %v1255 = vsel %vm258, %v806, 0
  %v1258 = vsel %vm818, %v1250, 0
  %1260 = vmatprep.subr.bf16.mxu0 0
  %1261 = vmatpush1.bf16.msra.mxu0 0
  %1262 = vmatprep.subr.bf16.mxu0 0
  %1263 = vmatpush1.bf16.msra.mxu0 0
  %1264 = vmatprep.subr.bf16.mxu0 0
  %1265 = vmatpush1.bf16.msra.mxu0 0
  %1266 = vmatprep.subr.bf16.mxu0 0
  %1267 = vmatpush1.bf16.msra.mxu0 0
  %1268 = vmatprep.subr.bf16.mxu0 0
  %1269 = vmatpush1.bf16.msra.mxu0 0
  %1270 = vmatprep.subr.bf16.mxu0 0
  %1271 = vmatpush1.bf16.msra.mxu0 0
  %1272 = vmatprep.subr.bf16.mxu0 0
  %1273 = vmatpush1.bf16.msra.mxu0 0
  %1274 = vmatprep.subr.bf16.mxu0 0
  %1275 = vmatpush1.bf16.msra.mxu0 %v1258
  %1276 = vmatprep.subr.bf16.mxu0 0
  %1277 = vmatpush2.bf16.msra.mxu0 0
  %1278 = vmatprep.subr.bf16.mxu0 0
  %1279 = vmatpush2.bf16.msra.mxu0 0
  %1280 = vmatprep.subr.bf16.mxu0 0
  %1281 = vmatpush2.bf16.msra.mxu0 0
  %1282 = vmatprep.subr.bf16.mxu0 0
  %1283 = vmatpush2.bf16.msra.mxu0 0
  %1284 = vmatprep.subr.bf16.mxu0 0
  %1285 = vmatpush2.bf16.msra.mxu0 0
  %1286 = vmatprep.subr.bf16.mxu0 0
  %1287 = vmatpush2.bf16.msra.mxu0 0
  %1288 = vmatprep.subr.bf16.mxu0 0
  %1289 = vmatpush2.bf16.msra.mxu0 0
  %1290 = vmatprep.subr.bf16.mxu0 0
  %1291 = vmatpush2.bf16.msra.mxu0 0
  %1292 = vmatprep.mubr.bf16.mxu0 0
  %1293 = vmatmul.mubr.bf16.gmra.mxu0 %v1252
  %v1294 = vpop.f32.mrf.mxu0
  %v1295 = vadd.f32 0.0, %v1294
  %v1296 = vpop.f32.mrf.mxu0
  %v1297 = vpop.f32.mrf.mxu0
  %v1298 = vadd.f32 0.0, %v1297
  %v1299 = vpop.f32.mrf.mxu0
  %1300 = vmatprep.mubr.bf16.mxu0 0
  %1301 = vmatmul.mubr.bf16.gmra.mxu0 %v1255
  %v1302 = vpop.f32.mrf.mxu0
  %v1303 = vadd.f32 0.0, %v1302
  %v1304 = vpop.f32.mrf.mxu0
  %v1305 = vpop.f32.mrf.mxu0
  %v1306 = vadd.f32 0.0, %v1305
  %v1307 = vpop.f32.mrf.mxu0
  %1308 = vdwg.mxu0
  %v1309 = vadd.f32 %v1245, %v1295
  %v1310 = vadd.f32 %v1246, %v1298
  %v1311 = vadd.f32 %v1247, %v1303
  %v1312 = vadd.f32 %v1248, %v1306
  %s1313 = scalar_lea.vmem %s6, 32
  %v1314 = vld [vmem:[%s1313] sm:$0xf]
  %v1316 = vsel %vm258, %v807, 0
  %v1319 = vsel %vm258, %v808, 0
  %v1322 = vsel %vm818, %v1314, 0
  %1324 = vmatprep.subr.bf16.mxu0 0
  %1325 = vmatpush1.bf16.msra.mxu0 0
  %1326 = vmatprep.subr.bf16.mxu0 0
  %1327 = vmatpush1.bf16.msra.mxu0 0
  %1328 = vmatprep.subr.bf16.mxu0 0
  %1329 = vmatpush1.bf16.msra.mxu0 0
  %1330 = vmatprep.subr.bf16.mxu0 0
  %1331 = vmatpush1.bf16.msra.mxu0 0
  %1332 = vmatprep.subr.bf16.mxu0 0
  %1333 = vmatpush1.bf16.msra.mxu0 0
  %1334 = vmatprep.subr.bf16.mxu0 0
  %1335 = vmatpush1.bf16.msra.mxu0 0
  %1336 = vmatprep.subr.bf16.mxu0 0
  %1337 = vmatpush1.bf16.msra.mxu0 0
  %1338 = vmatprep.subr.bf16.mxu0 0
  %1339 = vmatpush1.bf16.msra.mxu0 %v1322
  %1340 = vmatprep.subr.bf16.mxu0 0
  %1341 = vmatpush2.bf16.msra.mxu0 0
  %1342 = vmatprep.subr.bf16.mxu0 0
  %1343 = vmatpush2.bf16.msra.mxu0 0
  %1344 = vmatprep.subr.bf16.mxu0 0
  %1345 = vmatpush2.bf16.msra.mxu0 0
  %1346 = vmatprep.subr.bf16.mxu0 0
  %1347 = vmatpush2.bf16.msra.mxu0 0
  %1348 = vmatprep.subr.bf16.mxu0 0
  %1349 = vmatpush2.bf16.msra.mxu0 0
  %1350 = vmatprep.subr.bf16.mxu0 0
  %1351 = vmatpush2.bf16.msra.mxu0 0
  %1352 = vmatprep.subr.bf16.mxu0 0
  %1353 = vmatpush2.bf16.msra.mxu0 0
  %1354 = vmatprep.subr.bf16.mxu0 0
  %1355 = vmatpush2.bf16.msra.mxu0 0
  %1356 = vmatprep.mubr.bf16.mxu0 0
  %1357 = vmatmul.mubr.bf16.gmra.mxu0 %v1316
  %v1358 = vpop.f32.mrf.mxu0
  %v1359 = vadd.f32 0.0, %v1358
  %v1360 = vpop.f32.mrf.mxu0
  %v1361 = vpop.f32.mrf.mxu0
  %v1362 = vadd.f32 0.0, %v1361
  %v1363 = vpop.f32.mrf.mxu0
  %1364 = vmatprep.mubr.bf16.mxu0 0
  %1365 = vmatmul.mubr.bf16.gmra.mxu0 %v1319
  %v1366 = vpop.f32.mrf.mxu0
  %v1367 = vadd.f32 0.0, %v1366
  %v1368 = vpop.f32.mrf.mxu0
  %v1369 = vpop.f32.mrf.mxu0
  %v1370 = vadd.f32 0.0, %v1369
  %v1371 = vpop.f32.mrf.mxu0
  %1372 = vdwg.mxu0
  %v1373 = vadd.f32 %v1309, %v1359
  %v1374 = vadd.f32 %v1310, %v1362
  %v1375 = vadd.f32 %v1311, %v1367
  %v1376 = vadd.f32 %v1312, %v1370
  %v1377 = vld [vmem:[%s7] sm:$0x1]
  %v1379 = vlaneseq
  %v1380 = vshrl.u32 %v1379, 7
  %v1381 = vsub.s32 0, %v1380
  %v1382 = vrot.slane %v1377, %v1381
  %v1384 = vadd.f32 %v1373, %v1382
  %v1385 = vadd.f32 %v1374, %v1382
  %v1386 = vadd.f32 %v1375, %v1382
  %v1387 = vadd.f32 %v1376, %v1382
  %v1388 = vld [vmem:[%s8] sm:$0x1]
  %v1389 = vld [vmem:[%s9] sm:$0x1]
  %vm1390 = vcmask 130048
  %v1391 = vsel %vm1390, %v1384, 0.0
  %v1392 = vsel %vm1390, %v1385, 0.0
  %v1393 = vadd.f32 %v1391, %v1392
  %v1394 = vsel %vm1390, %v1386, 0.0
  %v1395 = vadd.f32 %v1393, %v1394
  %v1396 = vsel %vm1390, %v1387, 0.0
  %v1397 = vadd.f32 %v1395, %v1396
  %v1398 = vrot.slane %v1397, 4
  %v1399 = vadd.f32 %v1397, %v1398
  %v1400 = vrot.slane %v1399, 2
  %v1401 = vadd.f32 %v1399, %v1400
  %v1402 = vrot.slane %v1401, 1
  %v1403 = vadd.f32 %v1401, %v1402
  %v1404 = vmul.f32 %v1403, 0.03125
  %v1405 = vsub.f32 %v1384, %v1404
  %v1406 = vsub.f32 %v1385, %v1404
  %v1407 = vsub.f32 %v1386, %v1404
  %v1408 = vsub.f32 %v1387, %v1404
  %v1409 = vmul.f32 %v1405, %v1405
  %v1410 = vmul.f32 %v1406, %v1406
  %v1411 = vmul.f32 %v1407, %v1407
  %v1412 = vmul.f32 %v1408, %v1408
  %v1413 = vsel %vm1390, %v1409, 0.0
  %v1414 = vsel %vm1390, %v1410, 0.0
  %v1415 = vadd.f32 %v1413, %v1414
  %v1416 = vsel %vm1390, %v1411, 0.0
  %v1417 = vadd.f32 %v1415, %v1416
  %v1418 = vsel %vm1390, %v1412, 0.0
  %v1419 = vadd.f32 %v1417, %v1418
  %v1420 = vrot.slane %v1419, 4
  %v1421 = vadd.f32 %v1419, %v1420
  %v1422 = vrot.slane %v1421, 2
  %v1423 = vadd.f32 %v1421, %v1422
  %v1424 = vrot.slane %v1423, 1
  %v1425 = vadd.f32 %v1423, %v1424
  %v1426 = vmul.f32 %v1425, 0.03125
  %v1427 = vadd.f32 %v1426, 1e-05
  %v1428 = vrsqrt.pop %v1427
  %v1429 = vmul.f32 %v1388, %v1428
  %v1431 = vlaneseq
  %v1432 = vshrl.u32 %v1431, 7
  %v1433 = vsub.s32 0, %v1432
  %v1434 = vrot.slane %v1429, %v1433
  %v1436 = vmul.f32 %v1434, %v1405
  %v1437 = vmul.f32 %v1434, %v1406
  %v1438 = vmul.f32 %v1434, %v1407
  %v1439 = vmul.f32 %v1434, %v1408
  %v1441 = vlaneseq
  %v1442 = vshrl.u32 %v1441, 7
  %v1443 = vsub.s32 0, %v1442
  %v1444 = vrot.slane %v1389, %v1443
  %v1446 = vadd.f32 %v1436, %v1444
  %v1447 = vadd.f32 %v1437, %v1444
  %v1448 = vadd.f32 %v1438, %v1444
  %v1449 = vadd.f32 %v1439, %v1444
  %vm1450 = vcmp.ge.f32.partialorder %v1446, 0.0
  %vm1451 = vcmp.ge.f32.partialorder %v1447, 0.0
  %vm1452 = vcmp.ge.f32.partialorder %v1448, 0.0
  %vm1453 = vcmp.ge.f32.partialorder %v1449, 0.0
  %v1454 = vmul.f32 %v1446, 0.2
  %v1455 = vmul.f32 %v1447, 0.2
  %v1456 = vmul.f32 %v1448, 0.2
  %v1457 = vmul.f32 %v1449, 0.2
  %v1458 = vsel %vm1450, %v1446, %v1454
  %v1459 = vsel %vm1451, %v1447, %v1455
  %v1460 = vsel %vm1452, %v1448, %v1456
  %v1461 = vsel %vm1453, %v1449, %v1457
  %v1462 = vld [vmem:[%s10] sm:$0xff]
  %v1463 = vld [vmem:[%s10 + $0x8] sm:$0xff]
  %v1464 = vld [vmem:[%s10 + $0x10] sm:$0xff]
  %v1465 = vld [vmem:[%s10 + $0x18] sm:$0xff]
  %v1466 = vmul.f32 %v1458, %v1462
  %v1467 = vmul.f32 %v1459, %v1463
  %v1468 = vmul.f32 %v1460, %v1464
  %v1469 = vmul.f32 %v1461, %v1465
  %v1470 = vld [vmem:[%s11] sm:$0x3]
  %vm1471 = vcmask 261120
  %v1473 = vsel %vm1471, %v1470, 0
  %1475 = vmatprep.subr.mxu0 0.0
  %1476 = vmatpush1.msra.mxu0 0.0
  %1477 = vmatprep.subr.mxu0 0.0
  %1478 = vmatpush1.msra.mxu0 0.0
  %1479 = vmatprep.subr.mxu0 0.0
  %1480 = vmatpush1.msra.mxu0 0.0
  %1481 = vmatprep.subr.mxu0 0.0
  %1482 = vmatpush1.msra.mxu0 0.0
  %1483 = vmatprep.subr.mxu0 0.0
  %1484 = vmatpush1.msra.mxu0 0.0
  %1485 = vmatprep.subr.mxu0 0.0
  %1486 = vmatpush1.msra.mxu0 0.0
  %1487 = vmatprep.subr.mxu0 0.0
  %1488 = vmatpush1.msra.mxu0 0.0
  %1489 = vmatprep.subr.mxu0 0.0
  %1490 = vmatpush1.msra.mxu0 0.0
  %1491 = vmatprep.subr.mxu0 0.0
  %1492 = vmatpush1.msra.mxu0 0.0
  %1493 = vmatprep.subr.mxu0 0.0
  %1494 = vmatpush1.msra.mxu0 0.0
  %1495 = vmatprep.subr.mxu0 0.0
  %1496 = vmatpush1.msra.mxu0 0.0
  %1497 = vmatprep.subr.mxu0 0.0
  %1498 = vmatpush1.msra.mxu0 0.0
  %1499 = vmatprep.subr.mxu0 0.0
  %1500 = vmatpush1.msra.mxu0 %v1469
  %1501 = vmatprep.subr.mxu0 0.0
  %1502 = vmatpush1.msra.mxu0 %v1468
  %1503 = vmatprep.subr.mxu0 0.0
  %1504 = vmatpush1.msra.mxu0 %v1467
  %1505 = vmatprep.subr.mxu0 0.0
  %1506 = vmatpush1.msra.mxu0 %v1466
  %1507 = vmatprep.subr.mxu0 0.0
  %1508 = vmatpush2.msra.mxu0 0.0
  %1509 = vmatprep.subr.mxu0 0.0
  %1510 = vmatpush2.msra.mxu0 0.0
  %1511 = vmatprep.subr.mxu0 0.0
  %1512 = vmatpush2.msra.mxu0 0.0
  %1513 = vmatprep.subr.mxu0 0.0
  %1514 = vmatpush2.msra.mxu0 0.0
  %1515 = vmatprep.subr.mxu0 0.0
  %1516 = vmatpush2.msra.mxu0 0.0
  %1517 = vmatprep.subr.mxu0 0.0
  %1518 = vmatpush2.msra.mxu0 0.0
  %1519 = vmatprep.subr.mxu0 0.0
  %1520 = vmatpush2.msra.mxu0 0.0
  %1521 = vmatprep.subr.mxu0 0.0
  %1522 = vmatpush2.msra.mxu0 0.0
  %1523 = vmatprep.subr.mxu0 0.0
  %1524 = vmatpush2.msra.mxu0 0.0
  %1525 = vmatprep.subr.mxu0 0.0
  %1526 = vmatpush2.msra.mxu0 0.0
  %1527 = vmatprep.subr.mxu0 0.0
  %1528 = vmatpush2.msra.mxu0 0.0
  %1529 = vmatprep.subr.mxu0 0.0
  %1530 = vmatpush2.msra.mxu0 0.0
  %1531 = vmatprep.subr.mxu0 0.0
  %1532 = vmatpush2.msra.mxu0 0.0
  %1533 = vmatprep.subr.mxu0 0.0
  %1534 = vmatpush2.msra.mxu0 0.0
  %1535 = vmatprep.subr.mxu0 0.0
  %1536 = vmatpush2.msra.mxu0 0.0
  %1537 = vmatprep.subr.mxu0 0.0
  %1538 = vmatpush2.msra.mxu0 0.0
  %1539 = vmatprep.mubr.f32.mxu0 0.0
  %1540 = vmatmul.mubr.f32.gmra.mxu0 %v1473
  %v1541 = vpop.f32.mrf.mxu0
  %v1542 = vadd.f32 0.0, %v1541
  %v1543 = vpop.f32.mrf.mxu0
  %1544 = vdwg.mxu0
  %vm1545 = vcmask 123904
  %v1546 = vsel %vm1545, %v1542, 0.0
  %1547 = vadd.xlane.f32.xlu0 %v1546
  %v1548 = vpop.xlane.xlu0 %1547
  %v1549 = vld [vmem:[#allocation2] sm:$0x1]
  %v1551 = vlaneseq
  %v1552 = vshrl.u32 %v1551, 7
  %v1553 = vsub.s32 0, %v1552
  %v1554 = vrot.slane %v1549, %v1553
  %v1556 = vadd.f32 %v1548, %v1554
  %v1557 = vsub.f32 0.0, %v1556
  %v1558 = vmul.f32 %v1557, 1.442695
  %v1559 = vpow.pop %v1558
  %v1560 = vadd.f32 %v1559, 1.0
  %v1561 = vrcp.pop %v1560
  %v1562 = vmul.f32 1.0, %v1561
  %vm1563 = vcmask 1024
  %1564 = vst.msk [vmem:[%s13] sm:$0x3] %vm1563, %v1562
  // Predicated region
  $region54: #{_lambda_.1} parent=0 // pred_check
    _
  $region55: #{_lambda_.1} parent=0 // pred_check_branch
    %1566 = sbr.rel (0) target = $region57
  $region56: #{_lambda_.1} parent=0 // pred_region
    _
  $region57: #{_lambda_.1} parent=0 // pred_fallthru
    _
  // Predicated region
  $region58: #{_lambda_.1} parent=0 // pred_check
    _
  $region59: #{_lambda_.1} parent=0 // pred_check_branch
    %1568 = sbr.rel (0) target = $region61
  $region60: #{_lambda_.1} parent=0 // pred_region
    _
  $region61: #{_lambda_.1} parent=0 // pred_fallthru
    _

</llo_original>
